<compile_context>
chip_gen: v6e
topology: v6e:2x2x1
jax: 0.10.0
libtpu: 0.0.40
codegen_flags: <defaults>
</compile_context>

<pallas_src>
import math
import jax
import jax.numpy as jnp
from jax import lax
from jax.experimental import pallas as pl
from jax.experimental.pallas import tpu as pltpu

CHANNELS = 32
HEADS = 4
HEAD_DIM = CHANNELS // HEADS
EPS = 1e-5
NEG_INF = -1e30


def _make_gps_kernel(n_real: int, n_pad: int, use_bf16_probs: bool):
    """Fused GPSConv forward: block-diagonal MHA + residual + BatchNorm + MLP."""
    inv_n = 1.0 / float(n_real)
    H, D, C = HEADS, HEAD_DIM, CHANNELS

    def kernel(x_ref, gidr_ref, gidc_ref, wqkv_ref, bqkv_ref, wo_ref, bo_ref,
               gamma_ref, beta_ref, w1_ref, b1_ref, w2_ref, b2_ref, o_ref):
        x = x_ref[...]                                     # (Np, C) nodes (zero-padded rows)
        gid_r = gidr_ref[...]                              # (Np, 1) int32 graph id, -1 = padding
        gid_c = gidc_ref[...]                              # (1, Np) int32

        # Block-diagonal "same graph" mask.  Padded rows (id -1) attend only to each other;
        # their finite garbage is excluded from the BN stats and sliced off by the wrapper.
        same = gid_r == gid_c                              # (Np, Np) bool

        # ONE fused 2-D QKV projection: (Np, C) @ (C, 3C) -> (Np, 3C); Q pre-scaled.
        qkv = jnp.dot(x, wqkv_ref[...],
                      preferred_element_type=jnp.float32) + bqkv_ref[...]
        wo = wo_ref[...]                                   # (C, C); rows h*D:(h+1)*D = head h

        # Stream attention one head at a time so only one (Np, Np) score/prob tile is live.
        # TODO(synk): for large N, add a query-row grid axis ("parallel") with flash-style
        # online softmax over KV blocks + two-pass BatchNorm stats, and move the head loop
        # to lax.fori_loop to hard-bound live ranges.
        attn = jnp.zeros((n_pad, C), jnp.float32)
        for h in range(H):
            q = qkv[:, h * D:(h + 1) * D]                  # (Np, D)
            k = qkv[:, C + h * D:C + (h + 1) * D]          # (Np, D)
            v = qkv[:, 2 * C + h * D:2 * C + (h + 1) * D]  # (Np, D)

            # Fold the output projection into V: (Np, D) @ (D, C) -> (Np, C).
            vo = jnp.dot(v, wo[h * D:(h + 1) * D, :],
                         preferred_element_type=jnp.float32)

            # Scores q @ k^T without materializing a transpose.
            s = lax.dot_general(q, k, (((1,), (1,)), ((), ())),
                                preferred_element_type=jnp.float32)     # (Np, Np)
            s = jnp.where(same, s, NEG_INF)
            s = s - jnp.max(s, axis=-1, keepdims=True)
            p = jnp.exp(s)
            p = p * pl.reciprocal(jnp.sum(p, axis=-1, keepdims=True), approx=True)

            if use_bf16_probs:       # v6e/v7x: bf16 VPU/EUP -> halve prob-tile traffic
                p = p.astype(jnp.bfloat16)
                vo = vo.astype(jnp.bfloat16)
            attn = attn + jnp.dot(p, vo, preferred_element_type=jnp.float32)

        attn = attn + bo_ref[...]

        # Residual + training-mode BatchNorm over the n_real valid rows (one-pass stats).
        h_res = attn + x
        valid = (gid_r >= 0).astype(jnp.float32)           # (Np, 1) 1.0 for real nodes
        hv = h_res * valid
        s1 = jnp.sum(hv, axis=0, keepdims=True)
        s2 = jnp.sum(hv * h_res, axis=0, keepdims=True)
        mean = s1 * inv_n
        var = jnp.maximum(s2 * inv_n - mean * mean, 0.0)
        hn = (h_res - mean) * lax.rsqrt(var + EPS) * gamma_ref[...] + beta_ref[...]

        # MLP (C -> 2C -> C) with residual.  Dropout p=0.0 is identity.
        z = jnp.dot(hn, w1_ref[...], preferred_element_type=jnp.float32) + b1_ref[...]
        z = jnp.maximum(z, 0.0)
        o_ref[...] = hn + jnp.dot(z, w2_ref[...],
                                  preferred_element_type=jnp.float32) + b2_ref[...]
        # TODO(synk): norm3's output is discarded by the reference forward -> skipped.

    return kernel


def gps_conv_forward(x, batch, params, use_bf16_probs=None):
    N, C = x.shape
    D = HEAD_DIM

    if use_bf16_probs is None:
        try:
            dk = jax.devices()[0].device_kind.lower()
        except Exception:
            dk = ""
        # bf16 softmax/PV only where the VPU/EUP support bf16 (v6e / v7x); f32 on v5e & older.
        use_bf16_probs = ("v6" in dk) or ("v7" in dk)

    # Lane-dense score tiles once N is large; cheap 8-alignment for tiny N.
    align = 128 if N >= 512 else 8
    n_pad = ((N + align - 1) // align) * align
    pad = n_pad - N

    x_pad = jnp.pad(x, ((0, pad), (0, 0)))
    gid = jnp.pad(batch.astype(jnp.int32), (0, pad), constant_values=-1)
    gid_r = gid.reshape(n_pad, 1)
    gid_c = gid.reshape(1, n_pad)

    # Pack the fused (C, 3C) QKV weight / (1, 3C) bias in plain JAX (outside the kernel);
    # fold the 1/sqrt(HEAD_DIM) attention scale into the Q columns.  Column order is already
    # head-major ([h0 d0..d7 | h1 ... ]) so static lane slices inside the kernel pick heads.
    scale = 1.0 / math.sqrt(D)
    wqkv = jnp.concatenate([params["wq_t"] * scale, params["wk_t"], params["wv_t"]], axis=1)
    bqkv = jnp.concatenate([params["bq"] * scale, params["bk"], params["bv"]], axis=1)

    operands = (x_pad, gid_r, gid_c, wqkv, bqkv, params["wo_t"], params["bo"],
                params["gamma2"], params["beta2"],
                params["w1_t"], params["b1"], params["w2_t"], params["b2"])

    def full_spec(arr):
        nd = arr.ndim
        return pl.BlockSpec(arr.shape, lambda i, _nd=nd: (0,) * _nd)

    # Explicit VMEM budget sized to the streamed per-head working set:
    # qkv (Np,3C) + a few (Np,C) tiles + one (Np,Np) score + one prob tile + mask + weights.
    est = 4 * (n_pad * 3 * C + 6 * n_pad * C) + 3 * 4 * n_pad * n_pad + (1 << 21)
    vmem_limit = int(min(64 * (1 << 20), max(8 * (1 << 20), 2 * est)))

    out_pad = pl.pallas_call(
        _make_gps_kernel(N, n_pad, use_bf16_probs),
        out_shape=jax.ShapeDtypeStruct((n_pad, C), jnp.float32),
        grid=(1,),                               # all graphs batched into one grid step
        in_specs=[full_spec(a) for a in operands],
        out_specs=pl.BlockSpec((n_pad, C), lambda i: (0, 0)),
        compiler_params=pltpu.CompilerParams(
            dimension_semantics=("arbitrary",),
            vmem_limit_bytes=vmem_limit),
    )(*operands)
    # TODO(synk): when a query-row grid is added, give weight operands constant index_maps
    # (stay resident) and bucket graphs by size so the block-diagonal score block stays bounded.
    return out_pad[:N]


# --------------------------- pure-JAX reference (for check) ---------------------------
def gps_conv_reference(x, batch, pos, params, num_graphs, lmax):
    N, C = x.shape
    dense = jnp.zeros((num_graphs, lmax, C), x.dtype).at[batch, pos].set(x)
    maskf = jnp.zeros((num_graphs, lmax), x.dtype).at[batch, pos].set(1.0)
    q = dense @ params["wq_t"] + params["bq"]
    k = dense @ params["wk_t"] + params["bk"]
    v = dense @ params["wv_t"] + params["bv"]
    qh = q.reshape(num_graphs, lmax, HEADS, HEAD_DIM) / math.sqrt(HEAD_DIM)
    kh = k.reshape(num_graphs, lmax, HEADS, HEAD_DIM)
    vh = v.reshape(num_graphs, lmax, HEADS, HEAD_DIM)
    s = jnp.einsum("blhd,bmhd->bhlm", qh, kh)
    s = s + (1.0 - maskf)[:, None, None, :] * (-1e30)
    p = jax.nn.softmax(s, axis=-1)
    a = jnp.einsum("bhlm,bmhd->blhd", p, vh).reshape(num_graphs, lmax, C)
    attn = a @ params["wo_t"] + params["bo"]
    h = attn[batch, pos] + x
    mean = jnp.mean(h, axis=0, keepdims=True)
    var = jnp.mean((h - mean) ** 2, axis=0, keepdims=True)
    hn = (h - mean) * jax.lax.rsqrt(var + EPS) * params["gamma2"] + params["beta2"]
    z = jnp.maximum(hn @ params["w1_t"] + params["b1"], 0.0)
    return hn + z @ params["w2_t"] + params["b2"]


if __name__ == "__main__":
    key = jax.random.PRNGKey(0)
    C = CHANNELS
    sizes = [5, 8]                       # two graphs: 5 and 8 nodes
    B = len(sizes)
    lmax = max(sizes)
    N = sum(sizes)

    batch = jnp.concatenate([jnp.full((s,), i, jnp.int32) for i, s in enumerate(sizes)])
    pos = jnp.concatenate([jnp.arange(s, dtype=jnp.int32) for s in sizes])

    ks = jax.random.split(key, 16)

    def init(k, shape, scale=0.1):
        return jax.random.normal(k, shape, jnp.float32) * scale

    params = dict(
        wq_t=init(ks[0], (C, C)), wk_t=init(ks[1], (C, C)), wv_t=init(ks[2], (C, C)),
        bq=init(ks[3], (1, C), 0.05), bk=init(ks[4], (1, C), 0.05), bv=init(ks[5], (1, C), 0.05),
        wo_t=init(ks[6], (C, C)), bo=init(ks[7], (1, C), 0.05),
        gamma2=1.0 + init(ks[8], (1, C), 0.05), beta2=init(ks[9], (1, C), 0.05),
        w1_t=init(ks[10], (C, 2 * C)), b1=init(ks[11], (1, 2 * C), 0.05),
        w2_t=init(ks[12], (2 * C, C)), b2=init(ks[13], (1, C), 0.05),
    )

    x = jax.random.normal(ks[14], (N, C), jnp.float32)

    try:
        dk = jax.devices()[0].device_kind.lower()
    except Exception:
        dk = ""
    use_bf16 = ("v6" in dk) or ("v7" in dk)

    out = gps_conv_forward(x, batch, params, use_bf16_probs=use_bf16)
    out = jax.block_until_ready(out)

    ref = gps_conv_reference(x, batch, pos, params, B, lmax)
    assert out.shape == (N, C)
    # f32 path: tolerance only needs to cover the EUP approximate-reciprocal softmax.
    # bf16 prob/PV path (v6e/v7x): cover bf16 rounding of the probability tile as well.
    tol = 2e-2 if use_bf16 else 3e-3
    err = float(jnp.max(jnp.abs(out - ref)))
    assert jnp.allclose(out, ref, atol=tol, rtol=tol), err

    print("KERNEL_OK")
</pallas_src>

<mosaic_0001>
module attributes {stable_mosaic.version = 11 : i64} {
  func.func @kernel(%arg0: i32, %arg1: memref<16x32xf32, #tpu.memory_space<vmem>>, %arg2: memref<16x1xi32, #tpu.memory_space<vmem>>, %arg3: memref<1x16xi32, #tpu.memory_space<vmem>>, %arg4: memref<32x96xf32, #tpu.memory_space<vmem>>, %arg5: memref<1x96xf32, #tpu.memory_space<vmem>>, %arg6: memref<32x32xf32, #tpu.memory_space<vmem>>, %arg7: memref<1x32xf32, #tpu.memory_space<vmem>>, %arg8: memref<1x32xf32, #tpu.memory_space<vmem>>, %arg9: memref<1x32xf32, #tpu.memory_space<vmem>>, %arg10: memref<32x64xf32, #tpu.memory_space<vmem>>, %arg11: memref<1x64xf32, #tpu.memory_space<vmem>>, %arg12: memref<64x32xf32, #tpu.memory_space<vmem>>, %arg13: memref<1x32xf32, #tpu.memory_space<vmem>>, %arg14: memref<16x32xf32, #tpu.memory_space<vmem>>) attributes {dimension_semantics = [#tpu.dimension_semantics<arbitrary>], iteration_bounds = array<i64: 1>, scalar_prefetch = 0 : i64, scratch_operands = 0 : i64, tpu.core_type = #tpu.core_type<tc>, window_params = [{pipeline_mode = #tpu.pipeline_mode<synchronous>, transform_indices = @transform_0, window_bounds = array<i64: 16, 32>}, {pipeline_mode = #tpu.pipeline_mode<synchronous>, transform_indices = @transform_1, window_bounds = array<i64: 16, 1>}, {pipeline_mode = #tpu.pipeline_mode<synchronous>, transform_indices = @transform_2, window_bounds = array<i64: 1, 16>}, {pipeline_mode = #tpu.pipeline_mode<synchronous>, transform_indices = @transform_3, window_bounds = array<i64: 32, 96>}, {pipeline_mode = #tpu.pipeline_mode<synchronous>, transform_indices = @transform_4, window_bounds = array<i64: 1, 96>}, {pipeline_mode = #tpu.pipeline_mode<synchronous>, transform_indices = @transform_5, window_bounds = array<i64: 32, 32>}, {pipeline_mode = #tpu.pipeline_mode<synchronous>, transform_indices = @transform_6, window_bounds = array<i64: 1, 32>}, {pipeline_mode = #tpu.pipeline_mode<synchronous>, transform_indices = @transform_7, window_bounds = array<i64: 1, 32>}, {pipeline_mode = #tpu.pipeline_mode<synchronous>, transform_indices = @transform_8, window_bounds = array<i64: 1, 32>}, {pipeline_mode = #tpu.pipeline_mode<synchronous>, transform_indices = @transform_9, window_bounds = array<i64: 32, 64>}, {pipeline_mode = #tpu.pipeline_mode<synchronous>, transform_indices = @transform_10, window_bounds = array<i64: 1, 64>}, {pipeline_mode = #tpu.pipeline_mode<synchronous>, transform_indices = @transform_11, window_bounds = array<i64: 64, 32>}, {pipeline_mode = #tpu.pipeline_mode<synchronous>, transform_indices = @transform_12, window_bounds = array<i64: 1, 32>}, {pipeline_mode = #tpu.pipeline_mode<synchronous>, transform_indices = @transform_13, window_bounds = array<i64: 16, 32>}]} {
    %c0 = arith.constant 0 : index
    %c0_0 = arith.constant 0 : index
    %0 = vector.load %arg1[%c0, %c0_0] : memref<16x32xf32, #tpu.memory_space<vmem>>, vector<16x32xf32>
    %c0_1 = arith.constant 0 : index
    %c0_2 = arith.constant 0 : index
    %1 = vector.load %arg2[%c0_1, %c0_2] : memref<16x1xi32, #tpu.memory_space<vmem>>, vector<16x1xi32>
    %c0_3 = arith.constant 0 : index
    %c0_4 = arith.constant 0 : index
    %2 = vector.load %arg3[%c0_3, %c0_4] : memref<1x16xi32, #tpu.memory_space<vmem>>, vector<1x16xi32>
    %3 = vector.broadcast %1 : vector<16x1xi32> to vector<16x16xi32>
    %4 = vector.broadcast %2 : vector<1x16xi32> to vector<16x16xi32>
    %5 = arith.cmpi eq, %3, %4 : vector<16x16xi32>
    %c0_5 = arith.constant 0 : index
    %c0_6 = arith.constant 0 : index
    %6 = vector.load %arg4[%c0_5, %c0_6] : memref<32x96xf32, #tpu.memory_space<vmem>>, vector<32x96xf32>
    %cst = arith.constant dense<0.000000e+00> : vector<16x96xf32>
    %7 = tpu.matmul %0, %6, %cst {dimension_numbers = #tpu.dot_dimension_numbers<[1], [0], [0], [1], [0, 0, 1, 1], [], []>} : vector<16x32xf32>, vector<32x96xf32>, vector<16x96xf32> -> vector<16x96xf32>
    %c0_7 = arith.constant 0 : index
    %c0_8 = arith.constant 0 : index
    %8 = vector.load %arg5[%c0_7, %c0_8] : memref<1x96xf32, #tpu.memory_space<vmem>>, vector<1x96xf32>
    %9 = vector.broadcast %8 : vector<1x96xf32> to vector<16x96xf32>
    %10 = arith.addf %7, %9 : vector<16x96xf32>
    %c0_9 = arith.constant 0 : index
    %c0_10 = arith.constant 0 : index
    %11 = vector.load %arg6[%c0_9, %c0_10] : memref<32x32xf32, #tpu.memory_space<vmem>>, vector<32x32xf32>
    %cst_11 = arith.constant 0.000000e+00 : f32
    %12 = vector.broadcast %cst_11 : f32 to vector<16x32xf32>
    %13 = vector.extract_strided_slice %10 {offsets = [0, 0], sizes = [16, 8], strides = [1, 1]} : vector<16x96xf32> to vector<16x8xf32>
    %14 = vector.extract_strided_slice %10 {offsets = [0, 32], sizes = [16, 8], strides = [1, 1]} : vector<16x96xf32> to vector<16x8xf32>
    %15 = vector.extract_strided_slice %10 {offsets = [0, 64], sizes = [16, 8], strides = [1, 1]} : vector<16x96xf32> to vector<16x8xf32>
    %16 = vector.extract_strided_slice %11 {offsets = [0, 0], sizes = [8, 32], strides = [1, 1]} : vector<32x32xf32> to vector<8x32xf32>
    %cst_12 = arith.constant dense<0.000000e+00> : vector<16x32xf32>
    %17 = tpu.matmul %15, %16, %cst_12 {dimension_numbers = #tpu.dot_dimension_numbers<[1], [0], [0], [1], [0, 0, 1, 1], [], []>} : vector<16x8xf32>, vector<8x32xf32>, vector<16x32xf32> -> vector<16x32xf32>
    %cst_13 = arith.constant dense<0.000000e+00> : vector<16x16xf32>
    %18 = tpu.matmul %13, %14, %cst_13 {dimension_numbers = #tpu.dot_dimension_numbers<[1], [1], [0], [0], [0, 0, 1, 0], [], []>} : vector<16x8xf32>, vector<16x8xf32>, vector<16x16xf32> -> vector<16x16xf32>
    %cst_14 = arith.constant -1.000000e+30 : f32
    %19 = vector.broadcast %cst_14 : f32 to vector<16x16xf32>
    %20 = arith.select %5, %18, %19 : vector<16x16xi1>, vector<16x16xf32>
    %cst_15 = arith.constant dense<0xFF800000> : vector<16xf32>
    %21 = vector.multi_reduction <maximumf>, %20, %cst_15 [1] : vector<16x16xf32> to vector<16xf32>
    %22 = vector.shape_cast %21 : vector<16xf32> to vector<16x1xf32>
    %23 = vector.broadcast %22 : vector<16x1xf32> to vector<16x16xf32>
    %24 = arith.subf %20, %23 : vector<16x16xf32>
    %25 = math.exp %24 : vector<16x16xf32>
    %cst_16 = arith.constant dense<0.000000e+00> : vector<16xf32>
    %26 = vector.multi_reduction <add>, %25, %cst_16 [1] : vector<16x16xf32> to vector<16xf32>
    %27 = vector.shape_cast %26 : vector<16xf32> to vector<16x1xf32>
    %28 = tpu.reciprocal %27 {approx = true} : vector<16x1xf32> -> vector<16x1xf32>
    %29 = vector.broadcast %28 : vector<16x1xf32> to vector<16x16xf32>
    %30 = arith.mulf %25, %29 : vector<16x16xf32>
    %cst_17 = arith.constant dense<0.000000e+00> : vector<16x32xf32>
    %31 = tpu.matmul %30, %17, %cst_17 {dimension_numbers = #tpu.dot_dimension_numbers<[1], [0], [0], [1], [0, 0, 1, 1], [], []>} : vector<16x16xf32>, vector<16x32xf32>, vector<16x32xf32> -> vector<16x32xf32>
    %32 = arith.addf %12, %31 : vector<16x32xf32>
    %33 = vector.extract_strided_slice %10 {offsets = [0, 8], sizes = [16, 8], strides = [1, 1]} : vector<16x96xf32> to vector<16x8xf32>
    %34 = vector.extract_strided_slice %10 {offsets = [0, 40], sizes = [16, 8], strides = [1, 1]} : vector<16x96xf32> to vector<16x8xf32>
    %35 = vector.extract_strided_slice %10 {offsets = [0, 72], sizes = [16, 8], strides = [1, 1]} : vector<16x96xf32> to vector<16x8xf32>
    %36 = vector.extract_strided_slice %11 {offsets = [8, 0], sizes = [8, 32], strides = [1, 1]} : vector<32x32xf32> to vector<8x32xf32>
    %cst_18 = arith.constant dense<0.000000e+00> : vector<16x32xf32>
    %37 = tpu.matmul %35, %36, %cst_18 {dimension_numbers = #tpu.dot_dimension_numbers<[1], [0], [0], [1], [0, 0, 1, 1], [], []>} : vector<16x8xf32>, vector<8x32xf32>, vector<16x32xf32> -> vector<16x32xf32>
    %cst_19 = arith.constant dense<0.000000e+00> : vector<16x16xf32>
    %38 = tpu.matmul %33, %34, %cst_19 {dimension_numbers = #tpu.dot_dimension_numbers<[1], [1], [0], [0], [0, 0, 1, 0], [], []>} : vector<16x8xf32>, vector<16x8xf32>, vector<16x16xf32> -> vector<16x16xf32>
    %cst_20 = arith.constant -1.000000e+30 : f32
    %39 = vector.broadcast %cst_20 : f32 to vector<16x16xf32>
    %40 = arith.select %5, %38, %39 : vector<16x16xi1>, vector<16x16xf32>
    %cst_21 = arith.constant dense<0xFF800000> : vector<16xf32>
    %41 = vector.multi_reduction <maximumf>, %40, %cst_21 [1] : vector<16x16xf32> to vector<16xf32>
    %42 = vector.shape_cast %41 : vector<16xf32> to vector<16x1xf32>
    %43 = vector.broadcast %42 : vector<16x1xf32> to vector<16x16xf32>
    %44 = arith.subf %40, %43 : vector<16x16xf32>
    %45 = math.exp %44 : vector<16x16xf32>
    %cst_22 = arith.constant dense<0.000000e+00> : vector<16xf32>
    %46 = vector.multi_reduction <add>, %45, %cst_22 [1] : vector<16x16xf32> to vector<16xf32>
    %47 = vector.shape_cast %46 : vector<16xf32> to vector<16x1xf32>
    %48 = tpu.reciprocal %47 {approx = true} : vector<16x1xf32> -> vector<16x1xf32>
    %49 = vector.broadcast %48 : vector<16x1xf32> to vector<16x16xf32>
    %50 = arith.mulf %45, %49 : vector<16x16xf32>
    %cst_23 = arith.constant dense<0.000000e+00> : vector<16x32xf32>
    %51 = tpu.matmul %50, %37, %cst_23 {dimension_numbers = #tpu.dot_dimension_numbers<[1], [0], [0], [1], [0, 0, 1, 1], [], []>} : vector<16x16xf32>, vector<16x32xf32>, vector<16x32xf32> -> vector<16x32xf32>
    %52 = arith.addf %32, %51 : vector<16x32xf32>
    %53 = vector.extract_strided_slice %10 {offsets = [0, 16], sizes = [16, 8], strides = [1, 1]} : vector<16x96xf32> to vector<16x8xf32>
    %54 = vector.extract_strided_slice %10 {offsets = [0, 48], sizes = [16, 8], strides = [1, 1]} : vector<16x96xf32> to vector<16x8xf32>
    %55 = vector.extract_strided_slice %10 {offsets = [0, 80], sizes = [16, 8], strides = [1, 1]} : vector<16x96xf32> to vector<16x8xf32>
    %56 = vector.extract_strided_slice %11 {offsets = [16, 0], sizes = [8, 32], strides = [1, 1]} : vector<32x32xf32> to vector<8x32xf32>
    %cst_24 = arith.constant dense<0.000000e+00> : vector<16x32xf32>
    %57 = tpu.matmul %55, %56, %cst_24 {dimension_numbers = #tpu.dot_dimension_numbers<[1], [0], [0], [1], [0, 0, 1, 1], [], []>} : vector<16x8xf32>, vector<8x32xf32>, vector<16x32xf32> -> vector<16x32xf32>
    %cst_25 = arith.constant dense<0.000000e+00> : vector<16x16xf32>
    %58 = tpu.matmul %53, %54, %cst_25 {dimension_numbers = #tpu.dot_dimension_numbers<[1], [1], [0], [0], [0, 0, 1, 0], [], []>} : vector<16x8xf32>, vector<16x8xf32>, vector<16x16xf32> -> vector<16x16xf32>
    %cst_26 = arith.constant -1.000000e+30 : f32
    %59 = vector.broadcast %cst_26 : f32 to vector<16x16xf32>
    %60 = arith.select %5, %58, %59 : vector<16x16xi1>, vector<16x16xf32>
    %cst_27 = arith.constant dense<0xFF800000> : vector<16xf32>
    %61 = vector.multi_reduction <maximumf>, %60, %cst_27 [1] : vector<16x16xf32> to vector<16xf32>
    %62 = vector.shape_cast %61 : vector<16xf32> to vector<16x1xf32>
    %63 = vector.broadcast %62 : vector<16x1xf32> to vector<16x16xf32>
    %64 = arith.subf %60, %63 : vector<16x16xf32>
    %65 = math.exp %64 : vector<16x16xf32>
    %cst_28 = arith.constant dense<0.000000e+00> : vector<16xf32>
    %66 = vector.multi_reduction <add>, %65, %cst_28 [1] : vector<16x16xf32> to vector<16xf32>
    %67 = vector.shape_cast %66 : vector<16xf32> to vector<16x1xf32>
    %68 = tpu.reciprocal %67 {approx = true} : vector<16x1xf32> -> vector<16x1xf32>
    %69 = vector.broadcast %68 : vector<16x1xf32> to vector<16x16xf32>
    %70 = arith.mulf %65, %69 : vector<16x16xf32>
    %cst_29 = arith.constant dense<0.000000e+00> : vector<16x32xf32>
    %71 = tpu.matmul %70, %57, %cst_29 {dimension_numbers = #tpu.dot_dimension_numbers<[1], [0], [0], [1], [0, 0, 1, 1], [], []>} : vector<16x16xf32>, vector<16x32xf32>, vector<16x32xf32> -> vector<16x32xf32>
    %72 = arith.addf %52, %71 : vector<16x32xf32>
    %73 = vector.extract_strided_slice %10 {offsets = [0, 24], sizes = [16, 8], strides = [1, 1]} : vector<16x96xf32> to vector<16x8xf32>
    %74 = vector.extract_strided_slice %10 {offsets = [0, 56], sizes = [16, 8], strides = [1, 1]} : vector<16x96xf32> to vector<16x8xf32>
    %75 = vector.extract_strided_slice %10 {offsets = [0, 88], sizes = [16, 8], strides = [1, 1]} : vector<16x96xf32> to vector<16x8xf32>
    %76 = vector.extract_strided_slice %11 {offsets = [24, 0], sizes = [8, 32], strides = [1, 1]} : vector<32x32xf32> to vector<8x32xf32>
    %cst_30 = arith.constant dense<0.000000e+00> : vector<16x32xf32>
    %77 = tpu.matmul %75, %76, %cst_30 {dimension_numbers = #tpu.dot_dimension_numbers<[1], [0], [0], [1], [0, 0, 1, 1], [], []>} : vector<16x8xf32>, vector<8x32xf32>, vector<16x32xf32> -> vector<16x32xf32>
    %cst_31 = arith.constant dense<0.000000e+00> : vector<16x16xf32>
    %78 = tpu.matmul %73, %74, %cst_31 {dimension_numbers = #tpu.dot_dimension_numbers<[1], [1], [0], [0], [0, 0, 1, 0], [], []>} : vector<16x8xf32>, vector<16x8xf32>, vector<16x16xf32> -> vector<16x16xf32>
    %cst_32 = arith.constant -1.000000e+30 : f32
    %79 = vector.broadcast %cst_32 : f32 to vector<16x16xf32>
    %80 = arith.select %5, %78, %79 : vector<16x16xi1>, vector<16x16xf32>
    %cst_33 = arith.constant dense<0xFF800000> : vector<16xf32>
    %81 = vector.multi_reduction <maximumf>, %80, %cst_33 [1] : vector<16x16xf32> to vector<16xf32>
    %82 = vector.shape_cast %81 : vector<16xf32> to vector<16x1xf32>
    %83 = vector.broadcast %82 : vector<16x1xf32> to vector<16x16xf32>
    %84 = arith.subf %80, %83 : vector<16x16xf32>
    %85 = math.exp %84 : vector<16x16xf32>
    %cst_34 = arith.constant dense<0.000000e+00> : vector<16xf32>
    %86 = vector.multi_reduction <add>, %85, %cst_34 [1] : vector<16x16xf32> to vector<16xf32>
    %87 = vector.shape_cast %86 : vector<16xf32> to vector<16x1xf32>
    %88 = tpu.reciprocal %87 {approx = true} : vector<16x1xf32> -> vector<16x1xf32>
    %89 = vector.broadcast %88 : vector<16x1xf32> to vector<16x16xf32>
    %90 = arith.mulf %85, %89 : vector<16x16xf32>
    %cst_35 = arith.constant dense<0.000000e+00> : vector<16x32xf32>
    %91 = tpu.matmul %90, %77, %cst_35 {dimension_numbers = #tpu.dot_dimension_numbers<[1], [0], [0], [1], [0, 0, 1, 1], [], []>} : vector<16x16xf32>, vector<16x32xf32>, vector<16x32xf32> -> vector<16x32xf32>
    %92 = arith.addf %72, %91 : vector<16x32xf32>
    %c0_36 = arith.constant 0 : index
    %c0_37 = arith.constant 0 : index
    %93 = vector.load %arg7[%c0_36, %c0_37] : memref<1x32xf32, #tpu.memory_space<vmem>>, vector<1x32xf32>
    %94 = vector.broadcast %93 : vector<1x32xf32> to vector<16x32xf32>
    %95 = arith.addf %92, %94 : vector<16x32xf32>
    %96 = arith.addf %95, %0 : vector<16x32xf32>
    %c0_i32 = arith.constant 0 : i32
    %97 = vector.broadcast %c0_i32 : i32 to vector<16x1xi32>
    %98 = arith.cmpi sge, %1, %97 : vector<16x1xi32>
    %99 = arith.extui %98 : vector<16x1xi1> to vector<16x1xi32>
    %100 = arith.sitofp %99 : vector<16x1xi32> to vector<16x1xf32>
    %101 = vector.broadcast %100 : vector<16x1xf32> to vector<16x32xf32>
    %102 = arith.mulf %96, %101 : vector<16x32xf32>
    %cst_38 = arith.constant dense<0.000000e+00> : vector<32xf32>
    %103 = vector.multi_reduction <add>, %102, %cst_38 [0] : vector<16x32xf32> to vector<32xf32>
    %104 = vector.shape_cast %103 : vector<32xf32> to vector<1x32xf32>
    %105 = arith.mulf %102, %96 : vector<16x32xf32>
    %cst_39 = arith.constant dense<0.000000e+00> : vector<32xf32>
    %106 = vector.multi_reduction <add>, %105, %cst_39 [0] : vector<16x32xf32> to vector<32xf32>
    %107 = vector.shape_cast %106 : vector<32xf32> to vector<1x32xf32>
    %cst_40 = arith.constant 0.0769230798 : f32
    %108 = vector.broadcast %cst_40 : f32 to vector<1x32xf32>
    %109 = arith.mulf %104, %108 : vector<1x32xf32>
    %cst_41 = arith.constant 0.0769230798 : f32
    %110 = vector.broadcast %cst_41 : f32 to vector<1x32xf32>
    %111 = arith.mulf %107, %110 : vector<1x32xf32>
    %112 = arith.mulf %109, %109 : vector<1x32xf32>
    %113 = arith.subf %111, %112 : vector<1x32xf32>
    %cst_42 = arith.constant 0.000000e+00 : f32
    %114 = vector.broadcast %cst_42 : f32 to vector<1x32xf32>
    %115 = arith.maximumf %113, %114 : vector<1x32xf32>
    %116 = vector.broadcast %109 : vector<1x32xf32> to vector<16x32xf32>
    %117 = arith.subf %96, %116 : vector<16x32xf32>
    %cst_43 = arith.constant 9.99999974E-6 : f32
    %118 = vector.broadcast %cst_43 : f32 to vector<1x32xf32>
    %119 = arith.addf %115, %118 : vector<1x32xf32>
    %120 = math.rsqrt %119 : vector<1x32xf32>
    %121 = vector.broadcast %120 : vector<1x32xf32> to vector<16x32xf32>
    %122 = arith.mulf %117, %121 : vector<16x32xf32>
    %c0_44 = arith.constant 0 : index
    %c0_45 = arith.constant 0 : index
    %123 = vector.load %arg8[%c0_44, %c0_45] : memref<1x32xf32, #tpu.memory_space<vmem>>, vector<1x32xf32>
    %124 = vector.broadcast %123 : vector<1x32xf32> to vector<16x32xf32>
    %125 = arith.mulf %122, %124 : vector<16x32xf32>
    %c0_46 = arith.constant 0 : index
    %c0_47 = arith.constant 0 : index
    %126 = vector.load %arg9[%c0_46, %c0_47] : memref<1x32xf32, #tpu.memory_space<vmem>>, vector<1x32xf32>
    %127 = vector.broadcast %126 : vector<1x32xf32> to vector<16x32xf32>
    %128 = arith.addf %125, %127 : vector<16x32xf32>
    %c0_48 = arith.constant 0 : index
    %c0_49 = arith.constant 0 : index
    %129 = vector.load %arg10[%c0_48, %c0_49] : memref<32x64xf32, #tpu.memory_space<vmem>>, vector<32x64xf32>
    %cst_50 = arith.constant dense<0.000000e+00> : vector<16x64xf32>
    %130 = tpu.matmul %128, %129, %cst_50 {dimension_numbers = #tpu.dot_dimension_numbers<[1], [0], [0], [1], [0, 0, 1, 1], [], []>} : vector<16x32xf32>, vector<32x64xf32>, vector<16x64xf32> -> vector<16x64xf32>
    %c0_51 = arith.constant 0 : index
    %c0_52 = arith.constant 0 : index
    %131 = vector.load %arg11[%c0_51, %c0_52] : memref<1x64xf32, #tpu.memory_space<vmem>>, vector<1x64xf32>
    %132 = vector.broadcast %131 : vector<1x64xf32> to vector<16x64xf32>
    %133 = arith.addf %130, %132 : vector<16x64xf32>
    %cst_53 = arith.constant 0.000000e+00 : f32
    %134 = vector.broadcast %cst_53 : f32 to vector<16x64xf32>
    %135 = arith.maximumf %133, %134 : vector<16x64xf32>
    %c0_54 = arith.constant 0 : index
    %c0_55 = arith.constant 0 : index
    %136 = vector.load %arg12[%c0_54, %c0_55] : memref<64x32xf32, #tpu.memory_space<vmem>>, vector<64x32xf32>
    %cst_56 = arith.constant dense<0.000000e+00> : vector<16x32xf32>
    %137 = tpu.matmul %135, %136, %cst_56 {dimension_numbers = #tpu.dot_dimension_numbers<[1], [0], [0], [1], [0, 0, 1, 1], [], []>} : vector<16x64xf32>, vector<64x32xf32>, vector<16x32xf32> -> vector<16x32xf32>
    %138 = arith.addf %128, %137 : vector<16x32xf32>
    %c0_57 = arith.constant 0 : index
    %c0_58 = arith.constant 0 : index
    %139 = vector.load %arg13[%c0_57, %c0_58] : memref<1x32xf32, #tpu.memory_space<vmem>>, vector<1x32xf32>
    %140 = vector.broadcast %139 : vector<1x32xf32> to vector<16x32xf32>
    %141 = arith.addf %138, %140 : vector<16x32xf32>
    %c0_59 = arith.constant 0 : index
    %c0_60 = arith.constant 0 : index
    %142 = vector.load %arg14[%c0_59, %c0_60] : memref<16x32xf32, #tpu.memory_space<vmem>>, vector<16x32xf32>
    tpu.vector_store %arg14[%c0_59, %c0_60], %141 {strides = array<i32>} : memref<16x32xf32, #tpu.memory_space<vmem>>, vector<16x32xf32>,
    return
  }
  func.func @transform_0(%arg0: i32) -> (i32, i32) {
    %c0_i32 = arith.constant 0 : i32
    %c0_i32_0 = arith.constant 0 : i32
    %c0_i32_1 = arith.constant 0 : i32
    return %c0_i32, %c0_i32_0 : i32, i32
  }
  func.func @transform_1(%arg0: i32) -> (i32, i32) {
    %c0_i32 = arith.constant 0 : i32
    %c0_i32_0 = arith.constant 0 : i32
    %c0_i32_1 = arith.constant 0 : i32
    return %c0_i32, %c0_i32_0 : i32, i32
  }
  func.func @transform_2(%arg0: i32) -> (i32, i32) {
    %c0_i32 = arith.constant 0 : i32
    %c0_i32_0 = arith.constant 0 : i32
    %c0_i32_1 = arith.constant 0 : i32
    return %c0_i32, %c0_i32_0 : i32, i32
  }
  func.func @transform_3(%arg0: i32) -> (i32, i32) {
    %c0_i32 = arith.constant 0 : i32
    %c0_i32_0 = arith.constant 0 : i32
    %c0_i32_1 = arith.constant 0 : i32
    return %c0_i32, %c0_i32_0 : i32, i32
  }
  func.func @transform_4(%arg0: i32) -> (i32, i32) {
    %c0_i32 = arith.constant 0 : i32
    %c0_i32_0 = arith.constant 0 : i32
    %c0_i32_1 = arith.constant 0 : i32
    return %c0_i32, %c0_i32_0 : i32, i32
  }
  func.func @transform_5(%arg0: i32) -> (i32, i32) {
    %c0_i32 = arith.constant 0 : i32
    %c0_i32_0 = arith.constant 0 : i32
    %c0_i32_1 = arith.constant 0 : i32
    return %c0_i32, %c0_i32_0 : i32, i32
  }
  func.func @transform_6(%arg0: i32) -> (i32, i32) {
    %c0_i32 = arith.constant 0 : i32
    %c0_i32_0 = arith.constant 0 : i32
    %c0_i32_1 = arith.constant 0 : i32
    return %c0_i32, %c0_i32_0 : i32, i32
  }
  func.func @transform_7(%arg0: i32) -> (i32, i32) {
    %c0_i32 = arith.constant 0 : i32
    %c0_i32_0 = arith.constant 0 : i32
    %c0_i32_1 = arith.constant 0 : i32
    return %c0_i32, %c0_i32_0 : i32, i32
  }
  func.func @transform_8(%arg0: i32) -> (i32, i32) {
    %c0_i32 = arith.constant 0 : i32
    %c0_i32_0 = arith.constant 0 : i32
    %c0_i32_1 = arith.constant 0 : i32
    return %c0_i32, %c0_i32_0 : i32, i32
  }
  func.func @transform_9(%arg0: i32) -> (i32, i32) {
    %c0_i32 = arith.constant 0 : i32
    %c0_i32_0 = arith.constant 0 : i32
    %c0_i32_1 = arith.constant 0 : i32
    return %c0_i32, %c0_i32_0 : i32, i32
  }
  func.func @transform_10(%arg0: i32) -> (i32, i32) {
    %c0_i32 = arith.constant 0 : i32
    %c0_i32_0 = arith.constant 0 : i32
    %c0_i32_1 = arith.constant 0 : i32
    return %c0_i32, %c0_i32_0 : i32, i32
  }
  func.func @transform_11(%arg0: i32) -> (i32, i32) {
    %c0_i32 = arith.constant 0 : i32
    %c0_i32_0 = arith.constant 0 : i32
    %c0_i32_1 = arith.constant 0 : i32
    return %c0_i32, %c0_i32_0 : i32, i32
  }
  func.func @transform_12(%arg0: i32) -> (i32, i32) {
    %c0_i32 = arith.constant 0 : i32
    %c0_i32_0 = arith.constant 0 : i32
    %c0_i32_1 = arith.constant 0 : i32
    return %c0_i32, %c0_i32_0 : i32, i32
  }
  func.func @transform_13(%arg0: i32) -> (i32, i32) {
    %c0_i32 = arith.constant 0 : i32
    %c0_i32_0 = arith.constant 0 : i32
    %c0_i32_1 = arith.constant 0 : i32
    return %c0_i32, %c0_i32_0 : i32, i32
  }
}

</mosaic_0001>

<llo_original>
// kernel: tpu_custom_call.1
$region0: #{tpu_custom_call.1}
  #allocation0 [shape = 'u32[]', space=smem, size = 0x4, offset = 0x4, fixed_abs, tag = 'smem constant byte address 0x4 - core index']
  #allocation1 [shape = 'u32[144,128]{1,0:T(1,128)}', space=vmem, size = 0x12000, scoped, tag = 'internal scratch']
  %s0 = inlined_call_operand.hbm [shape: f32[16,32], index: 0, kind: input, shape index: {}]
  %s1 = inlined_call_operand.vmem [shape: s32[16,1], index: 1, kind: input, shape index: {}]
  %s2 = inlined_call_operand.vmem [shape: s32[1,16], index: 2, kind: input, shape index: {}]
  %s3 = inlined_call_operand.vmem [shape: f32[32,96], index: 3, kind: input, shape index: {}]
  %s4 = inlined_call_operand.vmem [shape: f32[1,96], index: 4, kind: input, shape index: {}]
  %s5 = inlined_call_operand.vmem [shape: f32[32,32], index: 5, kind: input, shape index: {}]
  %s6 = inlined_call_operand.vmem [shape: f32[1,32], index: 6, kind: input, shape index: {}]
  %s7 = inlined_call_operand.vmem [shape: f32[1,32], index: 7, kind: input, shape index: {}]
  %s8 = inlined_call_operand.vmem [shape: f32[1,32], index: 8, kind: input, shape index: {}]
  %s9 = inlined_call_operand.vmem [shape: f32[32,64], index: 9, kind: input, shape index: {}]
  %s10 = inlined_call_operand.hbm [shape: f32[1,64], index: 10, kind: input, shape index: {}]
  %s11 = inlined_call_operand.vmem [shape: f32[64,32], index: 11, kind: input, shape index: {}]
  %s12 = inlined_call_operand.vmem [shape: f32[1,32], index: 12, kind: input, shape index: {}]
  %s13 = inlined_call_operand.hbm [shape: f32[16,32], index: 13, kind: output, shape index: {}]
  %s14 = sld [smem:[#allocation0]]
  $region70: #{tpu_custom_call.1} parent=0
    _
  %s16 = ssub.s32 1, %s14
  %s17 = scalar_select 0, %s16, %s14
  $region1: #{tpu_custom_call.1} parent=0
    #allocation2 [shape = 'u8[8192]{0}', space=vmem, size = 0x2000, scoped, tag = 'input window, operand 0, single buffered']
    #allocation3 [shape = 's32[1]{0}', space=sflag, size = 0x4, scoped, tag = 'scoped memory for tpu_custom_call.1']
    #allocation4 [shape = 's32[1]{0}', space=sflag, size = 0x4, scoped, tag = 'scoped memory for tpu_custom_call.1']
    #allocation5 [shape = 'u8[512]{0}', space=vmem, size = 0x400, scoped, tag = 'input window, operand 10, single buffered']
    #allocation6 [shape = 's32[1]{0}', space=sflag, size = 0x4, scoped, tag = 'scoped memory for tpu_custom_call.1']
    #allocation7 [shape = 'u8[8192]{0}', space=vmem, size = 0x2000, scoped, tag = 'output window, operand 0, single buffered']
    %18 = vsyncpa [#allocation3], 0
    %19 = vsyncpa [#allocation6], 0
    %20 = vsyncpa [#allocation4], 0
    // Predicated region
    $region2: #{tpu_custom_call.1} parent=1 // pred_check
      _
    $region3: #{tpu_custom_call.1} parent=1 // pred_check_branch
      %22 = sbr.rel (0) target = $region5
    $region4: #{tpu_custom_call.1} parent=1 // pred_region
      %s24 = ssub.s32 256, 256
      %25 = vsyncadd [#allocation3], %s24
      %s26 = sshll.u32 [#allocation2], 4
      %s27 = int_to_ptr.vmem [resolvable:$true] %s26
      %32 = dma.hbm_to_vmem [thread:$0]  %s0, 256, %s27, [#allocation3], 128, 128, 8
    $region5: #{tpu_custom_call.1} parent=1 // pred_fallthru
      _
    // Predicated region
    $region6: #{tpu_custom_call.1} parent=1 // pred_check
      _
    $region7: #{tpu_custom_call.1} parent=1 // pred_check_branch
      %34 = sbr.rel (0) target = $region9
    $region8: #{tpu_custom_call.1} parent=1 // pred_region
      _
    $region9: #{tpu_custom_call.1} parent=1 // pred_fallthru
      _
    // Predicated region
    $region10: #{tpu_custom_call.1} parent=1 // pred_check
      _
    $region11: #{tpu_custom_call.1} parent=1 // pred_check_branch
      %36 = sbr.rel (0) target = $region13
    $region12: #{tpu_custom_call.1} parent=1 // pred_region
      _
    $region13: #{tpu_custom_call.1} parent=1 // pred_fallthru
      _
    // Predicated region
    $region14: #{tpu_custom_call.1} parent=1 // pred_check
      _
    $region15: #{tpu_custom_call.1} parent=1 // pred_check_branch
      %38 = sbr.rel (0) target = $region17
    $region16: #{tpu_custom_call.1} parent=1 // pred_region
      _
    $region17: #{tpu_custom_call.1} parent=1 // pred_fallthru
      _
    // Predicated region
    $region18: #{tpu_custom_call.1} parent=1 // pred_check
      _
    $region19: #{tpu_custom_call.1} parent=1 // pred_check_branch
      %40 = sbr.rel (0) target = $region21
    $region20: #{tpu_custom_call.1} parent=1 // pred_region
      _
    $region21: #{tpu_custom_call.1} parent=1 // pred_fallthru
      _
    // Predicated region
    $region22: #{tpu_custom_call.1} parent=1 // pred_check
      _
    $region23: #{tpu_custom_call.1} parent=1 // pred_check_branch
      %42 = sbr.rel (0) target = $region25
    $region24: #{tpu_custom_call.1} parent=1 // pred_region
      _
    $region25: #{tpu_custom_call.1} parent=1 // pred_fallthru
      _
    // Predicated region
    $region26: #{tpu_custom_call.1} parent=1 // pred_check
      _
    $region27: #{tpu_custom_call.1} parent=1 // pred_check_branch
      %44 = sbr.rel (0) target = $region29
    $region28: #{tpu_custom_call.1} parent=1 // pred_region
      _
    $region29: #{tpu_custom_call.1} parent=1 // pred_fallthru
      _
    // Predicated region
    $region30: #{tpu_custom_call.1} parent=1 // pred_check
      _
    $region31: #{tpu_custom_call.1} parent=1 // pred_check_branch
      %46 = sbr.rel (0) target = $region33
    $region32: #{tpu_custom_call.1} parent=1 // pred_region
      _
    $region33: #{tpu_custom_call.1} parent=1 // pred_fallthru
      _
    // Predicated region
    $region34: #{tpu_custom_call.1} parent=1 // pred_check
      _
    $region35: #{tpu_custom_call.1} parent=1 // pred_check_branch
      %48 = sbr.rel (0) target = $region37
    $region36: #{tpu_custom_call.1} parent=1 // pred_region
      _
    $region37: #{tpu_custom_call.1} parent=1 // pred_fallthru
      _
    // Predicated region
    $region38: #{tpu_custom_call.1} parent=1 // pred_check
      _
    $region39: #{tpu_custom_call.1} parent=1 // pred_check_branch
      %50 = sbr.rel (0) target = $region41
    $region40: #{tpu_custom_call.1} parent=1 // pred_region
      _
    $region41: #{tpu_custom_call.1} parent=1 // pred_fallthru
      _
    // Predicated region
    $region42: #{tpu_custom_call.1} parent=1 // pred_check
      _
    $region43: #{tpu_custom_call.1} parent=1 // pred_check_branch
      %52 = sbr.rel (0) target = $region45
    $region44: #{tpu_custom_call.1} parent=1 // pred_region
      %s54 = ssub.s32 16, 16
      %55 = vsyncadd [#allocation6], %s54
      %s57 = sshll.u32 [#allocation5], 4
      %s58 = int_to_ptr.vmem [resolvable:$true] %s57
      %60 = dma.hbm_to_vmem [thread:$0]  %s10, 16, %s58, [#allocation6]
    $region45: #{tpu_custom_call.1} parent=1 // pred_fallthru
      _
    // Predicated region
    $region46: #{tpu_custom_call.1} parent=1 // pred_check
      _
    $region47: #{tpu_custom_call.1} parent=1 // pred_check_branch
      %62 = sbr.rel (0) target = $region49
    $region48: #{tpu_custom_call.1} parent=1 // pred_region
      _
    $region49: #{tpu_custom_call.1} parent=1 // pred_fallthru
      _
    // Predicated region
    $region50: #{tpu_custom_call.1} parent=1 // pred_check
      _
    $region51: #{tpu_custom_call.1} parent=1 // pred_check_branch
      %64 = sbr.rel (0) target = $region53
    $region52: #{tpu_custom_call.1} parent=1 // pred_region
      _
    $region53: #{tpu_custom_call.1} parent=1 // pred_fallthru
      _
    // Predicated region
    $region54: #{tpu_custom_call.1} parent=1 // pred_check
      _
    $region55: #{tpu_custom_call.1} parent=1 // pred_check_branch
      %66 = sbr.rel (0) target = $region57
    $region56: #{tpu_custom_call.1} parent=1 // pred_region
      %67 = dma.done [#allocation3], 256
    $region57: #{tpu_custom_call.1} parent=1 // pred_fallthru
      _
    // Predicated region
    $region58: #{tpu_custom_call.1} parent=1 // pred_check
      _
    $region59: #{tpu_custom_call.1} parent=1 // pred_check_branch
      %69 = sbr.rel (0) target = $region61
    $region60: #{tpu_custom_call.1} parent=1 // pred_region
      %70 = dma.done [#allocation6], 16
    $region61: #{tpu_custom_call.1} parent=1 // pred_fallthru
      _
    %v71 = vld [vmem:[#allocation2] sm:$0xff]
    %v72 = vld [vmem:[#allocation2 + $0x8] sm:$0xff]
    %v73 = vld [vmem:[%s1] sm:$0xff]
    %v74 = vld [vmem:[%s1 + $0x8] sm:$0xff]
    %v75 = vld [vmem:[%s2] sm:$0x1]
    %76 = vset.pattern.permute.xlu0 0
    %77 = vperm.xlu0 %76, %v73
    %v78 = vpop.permute.xlu0 %77
    %79 = vset.pattern.permute.xlu0 0
    %80 = vperm.xlu0 %79, %v74
    %v81 = vpop.permute.xlu0 %80
    %v82 = vlaneseq
    %v83 = vshrl.u32 %v82, 7
    %v84 = vsub.s32 0, %v83
    %v85 = vrot.slane %v75, %v84
    %vm86 = vcmp.eq.s32.totalorder %v78, %v85
    %vm87 = vcmp.eq.s32.totalorder %v81, %v85
    %v88 = vld [vmem:[%s3] sm:$0xff]
    %v89 = vld [vmem:[%s3 + $0x8] sm:$0xff]
    %v90 = vld [vmem:[%s3 + $0x10] sm:$0xff]
    %v91 = vld [vmem:[%s3 + $0x18] sm:$0xff]
    %v92 = vld [vmem:[%s4] sm:$0x1]
    %v94 = vlaneseq
    %v95 = vshrl.u32 %v94, 7
    %v96 = vsub.s32 0, %v95
    %v97 = vrot.slane %v92, %v96
    %vm99 = vcmask 261120
    %v101 = vsel %vm99, %v71, 0
    %v104 = vsel %vm99, %v72, 0
    %106 = vmatprep.subr.mxu0 0.0
    %107 = vmatpush1.msra.mxu0 0.0
    %108 = vmatprep.subr.mxu0 0.0
    %109 = vmatpush1.msra.mxu0 0.0
    %110 = vmatprep.subr.mxu0 0.0
    %111 = vmatpush1.msra.mxu0 0.0
    %112 = vmatprep.subr.mxu0 0.0
    %113 = vmatpush1.msra.mxu0 0.0
    %114 = vmatprep.subr.mxu0 0.0
    %115 = vmatpush1.msra.mxu0 0.0
    %116 = vmatprep.subr.mxu0 0.0
    %117 = vmatpush1.msra.mxu0 0.0
    %118 = vmatprep.subr.mxu0 0.0
    %119 = vmatpush1.msra.mxu0 0.0
    %120 = vmatprep.subr.mxu0 0.0
    %121 = vmatpush1.msra.mxu0 0.0
    %122 = vmatprep.subr.mxu0 0.0
    %123 = vmatpush1.msra.mxu0 0.0
    %124 = vmatprep.subr.mxu0 0.0
    %125 = vmatpush1.msra.mxu0 0.0
    %126 = vmatprep.subr.mxu0 0.0
    %127 = vmatpush1.msra.mxu0 0.0
    %128 = vmatprep.subr.mxu0 0.0
    %129 = vmatpush1.msra.mxu0 0.0
    %130 = vmatprep.subr.mxu0 0.0
    %131 = vmatpush1.msra.mxu0 %v91
    %132 = vmatprep.subr.mxu0 0.0
    %133 = vmatpush1.msra.mxu0 %v90
    %134 = vmatprep.subr.mxu0 0.0
    %135 = vmatpush1.msra.mxu0 %v89
    %136 = vmatprep.subr.mxu0 0.0
    %137 = vmatpush1.msra.mxu0 %v88
    %138 = vmatprep.subr.mxu0 0.0
    %139 = vmatpush2.msra.mxu0 0.0
    %140 = vmatprep.subr.mxu0 0.0
    %141 = vmatpush2.msra.mxu0 0.0
    %142 = vmatprep.subr.mxu0 0.0
    %143 = vmatpush2.msra.mxu0 0.0
    %144 = vmatprep.subr.mxu0 0.0
    %145 = vmatpush2.msra.mxu0 0.0
    %146 = vmatprep.subr.mxu0 0.0
    %147 = vmatpush2.msra.mxu0 0.0
    %148 = vmatprep.subr.mxu0 0.0
    %149 = vmatpush2.msra.mxu0 0.0
    %150 = vmatprep.subr.mxu0 0.0
    %151 = vmatpush2.msra.mxu0 0.0
    %152 = vmatprep.subr.mxu0 0.0
    %153 = vmatpush2.msra.mxu0 0.0
    %154 = vmatprep.subr.mxu0 0.0
    %155 = vmatpush2.msra.mxu0 0.0
    %156 = vmatprep.subr.mxu0 0.0
    %157 = vmatpush2.msra.mxu0 0.0
    %158 = vmatprep.subr.mxu0 0.0
    %159 = vmatpush2.msra.mxu0 0.0
    %160 = vmatprep.subr.mxu0 0.0
    %161 = vmatpush2.msra.mxu0 0.0
    %162 = vmatprep.subr.mxu0 0.0
    %163 = vmatpush2.msra.mxu0 0.0
    %164 = vmatprep.subr.mxu0 0.0
    %165 = vmatpush2.msra.mxu0 0.0
    %166 = vmatprep.subr.mxu0 0.0
    %167 = vmatpush2.msra.mxu0 0.0
    %168 = vmatprep.subr.mxu0 0.0
    %169 = vmatpush2.msra.mxu0 0.0
    %170 = vmatprep.mubr.f32.mxu0 0.0
    %171 = vmatmul.mubr.f32.gmra.mxu0 %v101
    %v172 = vpop.f32.mrf.mxu0
    %v173 = vadd.f32 %v97, %v172
    %v174 = vpop.f32.mrf.mxu0
    %175 = vmatprep.mubr.f32.mxu0 0.0
    %176 = vmatmul.mubr.f32.gmra.mxu0 %v104
    %v177 = vpop.f32.mrf.mxu0
    %v178 = vadd.f32 %v97, %v177
    %v179 = vpop.f32.mrf.mxu0
    %180 = vdwg.mxu0
    %v181 = vld [vmem:[%s5] sm:$0xff]
    %v182 = vld [vmem:[%s5 + $0x8] sm:$0xff]
    %v183 = vld [vmem:[%s5 + $0x10] sm:$0xff]
    %v184 = vld [vmem:[%s5 + $0x18] sm:$0xff]
    %187 = vrot.lane.b32.xlu0 %v173, 64
    %v188 = vpop.permute.xlu0 %187
    %189 = vrot.lane.b32.xlu0 %v178, 64
    %v190 = vpop.permute.xlu0 %189
    %vm191 = vcmask 64512
    %v192 = vsel %vm191, %v188, 0
    %v194 = vsel %vm191, %v190, 0
    %196 = vmatprep.subr.mxu0 0.0
    %197 = vmatpush1.msra.mxu0 0.0
    %198 = vmatprep.subr.mxu0 0.0
    %199 = vmatpush1.msra.mxu0 0.0
    %200 = vmatprep.subr.mxu0 0.0
    %201 = vmatpush1.msra.mxu0 0.0
    %202 = vmatprep.subr.mxu0 0.0
    %203 = vmatpush1.msra.mxu0 0.0
    %204 = vmatprep.subr.mxu0 0.0
    %205 = vmatpush1.msra.mxu0 0.0
    %206 = vmatprep.subr.mxu0 0.0
    %207 = vmatpush1.msra.mxu0 0.0
    %208 = vmatprep.subr.mxu0 0.0
    %209 = vmatpush1.msra.mxu0 0.0
    %210 = vmatprep.subr.mxu0 0.0
    %211 = vmatpush1.msra.mxu0 0.0
    %212 = vmatprep.subr.mxu0 0.0
    %213 = vmatpush1.msra.mxu0 0.0
    %214 = vmatprep.subr.mxu0 0.0
    %215 = vmatpush1.msra.mxu0 0.0
    %216 = vmatprep.subr.mxu0 0.0
    %217 = vmatpush1.msra.mxu0 0.0
    %218 = vmatprep.subr.mxu0 0.0
    %219 = vmatpush1.msra.mxu0 0.0
    %220 = vmatprep.subr.mxu0 0.0
    %221 = vmatpush1.msra.mxu0 0.0
    %222 = vmatprep.subr.mxu0 0.0
    %223 = vmatpush1.msra.mxu0 0.0
    %224 = vmatprep.subr.mxu0 0.0
    %225 = vmatpush1.msra.mxu0 0.0
    %226 = vmatprep.subr.mxu0 0.0
    %227 = vmatpush1.msra.mxu0 %v181
    %228 = vmatprep.subr.mxu0 0.0
    %229 = vmatpush2.msra.mxu0 0.0
    %230 = vmatprep.subr.mxu0 0.0
    %231 = vmatpush2.msra.mxu0 0.0
    %232 = vmatprep.subr.mxu0 0.0
    %233 = vmatpush2.msra.mxu0 0.0
    %234 = vmatprep.subr.mxu0 0.0
    %235 = vmatpush2.msra.mxu0 0.0
    %236 = vmatprep.subr.mxu0 0.0
    %237 = vmatpush2.msra.mxu0 0.0
    %238 = vmatprep.subr.mxu0 0.0
    %239 = vmatpush2.msra.mxu0 0.0
    %240 = vmatprep.subr.mxu0 0.0
    %241 = vmatpush2.msra.mxu0 0.0
    %242 = vmatprep.subr.mxu0 0.0
    %243 = vmatpush2.msra.mxu0 0.0
    %244 = vmatprep.subr.mxu0 0.0
    %245 = vmatpush2.msra.mxu0 0.0
    %246 = vmatprep.subr.mxu0 0.0
    %247 = vmatpush2.msra.mxu0 0.0
    %248 = vmatprep.subr.mxu0 0.0
    %249 = vmatpush2.msra.mxu0 0.0
    %250 = vmatprep.subr.mxu0 0.0
    %251 = vmatpush2.msra.mxu0 0.0
    %252 = vmatprep.subr.mxu0 0.0
    %253 = vmatpush2.msra.mxu0 0.0
    %254 = vmatprep.subr.mxu0 0.0
    %255 = vmatpush2.msra.mxu0 0.0
    %256 = vmatprep.subr.mxu0 0.0
    %257 = vmatpush2.msra.mxu0 0.0
    %258 = vmatprep.subr.mxu0 0.0
    %259 = vmatpush2.msra.mxu0 0.0
    %260 = vmatprep.mubr.f32.mxu0 0.0
    %261 = vmatmul.mubr.f32.gmra.mxu0 %v192
    %v262 = vpop.f32.mrf.mxu0
    %v263 = vadd.f32 0.0, %v262
    %v264 = vpop.f32.mrf.mxu0
    %265 = vmatprep.mubr.f32.mxu0 0.0
    %266 = vmatmul.mubr.f32.gmra.mxu0 %v194
    %v267 = vpop.f32.mrf.mxu0
    %v268 = vadd.f32 0.0, %v267
    %v269 = vpop.f32.mrf.mxu0
    %270 = vdwg.mxu0
    %271 = vrot.lane.b32.xlu0 %v173, 96
    %v272 = vpop.permute.xlu0 %271
    %273 = vrot.lane.b32.xlu0 %v178, 96
    %v274 = vpop.permute.xlu0 %273
    %v275 = vsel %vm191, %v173, 0
    %v277 = vsel %vm191, %v178, 0
    %v279 = vsel %vm191, %v272, 0
    %v281 = vsel %vm191, %v274, 0
    %283 = vmatprep.subr.mxu0 0.0
    %284 = vmatpush1.xpose.msra.mxu0 0.0
    %285 = vmatprep.subr.mxu0 0.0
    %286 = vmatpush1.xpose.msra.mxu0 0.0
    %287 = vmatprep.subr.mxu0 0.0
    %288 = vmatpush1.xpose.msra.mxu0 0.0
    %289 = vmatprep.subr.mxu0 0.0
    %290 = vmatpush1.xpose.msra.mxu0 0.0
    %291 = vmatprep.subr.mxu0 0.0
    %292 = vmatpush1.xpose.msra.mxu0 0.0
    %293 = vmatprep.subr.mxu0 0.0
    %294 = vmatpush1.xpose.msra.mxu0 0.0
    %295 = vmatprep.subr.mxu0 0.0
    %296 = vmatpush1.xpose.msra.mxu0 0.0
    %297 = vmatprep.subr.mxu0 0.0
    %298 = vmatpush1.xpose.msra.mxu0 0.0
    %299 = vmatprep.subr.mxu0 0.0
    %300 = vmatpush1.xpose.msra.mxu0 0.0
    %301 = vmatprep.subr.mxu0 0.0
    %302 = vmatpush1.xpose.msra.mxu0 0.0
    %303 = vmatprep.subr.mxu0 0.0
    %304 = vmatpush1.xpose.msra.mxu0 0.0
    %305 = vmatprep.subr.mxu0 0.0
    %306 = vmatpush1.xpose.msra.mxu0 0.0
    %307 = vmatprep.subr.mxu0 0.0
    %308 = vmatpush1.xpose.msra.mxu0 0.0
    %309 = vmatprep.subr.mxu0 0.0
    %310 = vmatpush1.xpose.msra.mxu0 0.0
    %311 = vmatprep.subr.mxu0 0.0
    %312 = vmatpush1.xpose.msra.mxu0 %v281
    %313 = vmatprep.subr.mxu0 0.0
    %314 = vmatpush1.xpose.msra.mxu0 %v279
    %315 = vmatprep.subr.mxu0 0.0
    %316 = vmatpush2.xpose.msra.mxu0 0.0
    %317 = vmatprep.subr.mxu0 0.0
    %318 = vmatpush2.xpose.msra.mxu0 0.0
    %319 = vmatprep.subr.mxu0 0.0
    %320 = vmatpush2.xpose.msra.mxu0 0.0
    %321 = vmatprep.subr.mxu0 0.0
    %322 = vmatpush2.xpose.msra.mxu0 0.0
    %323 = vmatprep.subr.mxu0 0.0
    %324 = vmatpush2.xpose.msra.mxu0 0.0
    %325 = vmatprep.subr.mxu0 0.0
    %326 = vmatpush2.xpose.msra.mxu0 0.0
    %327 = vmatprep.subr.mxu0 0.0
    %328 = vmatpush2.xpose.msra.mxu0 0.0
    %329 = vmatprep.subr.mxu0 0.0
    %330 = vmatpush2.xpose.msra.mxu0 0.0
    %331 = vmatprep.subr.mxu0 0.0
    %332 = vmatpush2.xpose.msra.mxu0 0.0
    %333 = vmatprep.subr.mxu0 0.0
    %334 = vmatpush2.xpose.msra.mxu0 0.0
    %335 = vmatprep.subr.mxu0 0.0
    %336 = vmatpush2.xpose.msra.mxu0 0.0
    %337 = vmatprep.subr.mxu0 0.0
    %338 = vmatpush2.xpose.msra.mxu0 0.0
    %339 = vmatprep.subr.mxu0 0.0
    %340 = vmatpush2.xpose.msra.mxu0 0.0
    %341 = vmatprep.subr.mxu0 0.0
    %342 = vmatpush2.xpose.msra.mxu0 0.0
    %343 = vmatprep.subr.mxu0 0.0
    %344 = vmatpush2.xpose.msra.mxu0 0.0
    %345 = vmatprep.subr.mxu0 0.0
    %346 = vmatpush2.xpose.msra.mxu0 0.0
    %347 = vmatprep.mubr.f32.mxu0 0.0
    %348 = vmatmul.mubr.f32.gmra.mxu0 %v275
    %v349 = vpop.f32.mrf.mxu0
    %v350 = vadd.f32 0.0, %v349
    %v351 = vpop.f32.mrf.mxu0
    %352 = vmatprep.mubr.f32.mxu0 0.0
    %353 = vmatmul.mubr.f32.gmra.mxu0 %v277
    %v354 = vpop.f32.mrf.mxu0
    %v355 = vadd.f32 0.0, %v354
    %v356 = vpop.f32.mrf.mxu0
    %357 = vdwg.mxu0
    %v358 = vsel %vm86, %v350, -1e+30
    %v359 = vsel %vm87, %v355, -1e+30
    %vm360 = vcmask 130048
    %v361 = vsel %vm360, %v358, -inf
    %362 = vmax.xlane.f32.xlu0 %v361
    %v363 = vpop.xlane.xlu0 %362
    %v364 = vsel %vm360, %v359, -inf
    %365 = vmax.xlane.f32.xlu0 %v364
    %v366 = vpop.xlane.xlu0 %365
    %v367 = vsub.f32 %v358, %v363
    %v368 = vsub.f32 %v359, %v366
    %v369 = vmul.f32 %v367, 1.442695
    %v370 = vpow.pop %v369
    %v371 = vmul.f32 %v368, 1.442695
    %v372 = vpow.pop %v371
    %v373 = vsel %vm360, %v370, 0.0
    %374 = vadd.xlane.f32.xlu0 %v373
    %v375 = vpop.xlane.xlu0 %374
    %v376 = vsel %vm360, %v372, 0.0
    %377 = vadd.xlane.f32.xlu0 %v376
    %v378 = vpop.xlane.xlu0 %377
    %v379 = vrcp.pop %v375
    %v380 = vrcp.pop %v378
    %v381 = vmul.f32 %v370, %v379
    %v382 = vmul.f32 %v372, %v380
    %383 = vrot.lane.b32.xlu0 %v173, 56
    %v384 = vpop.permute.xlu0 %383
    %385 = vrot.lane.b32.xlu0 %v178, 56
    %v386 = vpop.permute.xlu0 %385
    %v387 = vsel %vm191, %v384, 0
    %v389 = vsel %vm191, %v386, 0
    %391 = vmatprep.subr.mxu0 0.0
    %392 = vmatpush1.msra.mxu0 0.0
    %393 = vmatprep.subr.mxu0 0.0
    %394 = vmatpush1.msra.mxu0 0.0
    %395 = vmatprep.subr.mxu0 0.0
    %396 = vmatpush1.msra.mxu0 0.0
    %397 = vmatprep.subr.mxu0 0.0
    %398 = vmatpush1.msra.mxu0 0.0
    %399 = vmatprep.subr.mxu0 0.0
    %400 = vmatpush1.msra.mxu0 0.0
    %401 = vmatprep.subr.mxu0 0.0
    %402 = vmatpush1.msra.mxu0 0.0
    %403 = vmatprep.subr.mxu0 0.0
    %404 = vmatpush1.msra.mxu0 0.0
    %405 = vmatprep.subr.mxu0 0.0
    %406 = vmatpush1.msra.mxu0 0.0
    %407 = vmatprep.subr.mxu0 0.0
    %408 = vmatpush1.msra.mxu0 0.0
    %409 = vmatprep.subr.mxu0 0.0
    %410 = vmatpush1.msra.mxu0 0.0
    %411 = vmatprep.subr.mxu0 0.0
    %412 = vmatpush1.msra.mxu0 0.0
    %413 = vmatprep.subr.mxu0 0.0
    %414 = vmatpush1.msra.mxu0 0.0
    %415 = vmatprep.subr.mxu0 0.0
    %416 = vmatpush1.msra.mxu0 0.0
    %417 = vmatprep.subr.mxu0 0.0
    %418 = vmatpush1.msra.mxu0 0.0
    %419 = vmatprep.subr.mxu0 0.0
    %420 = vmatpush1.msra.mxu0 0.0
    %421 = vmatprep.subr.mxu0 0.0
    %422 = vmatpush1.msra.mxu0 %v182
    %423 = vmatprep.subr.mxu0 0.0
    %424 = vmatpush2.msra.mxu0 0.0
    %425 = vmatprep.subr.mxu0 0.0
    %426 = vmatpush2.msra.mxu0 0.0
    %427 = vmatprep.subr.mxu0 0.0
    %428 = vmatpush2.msra.mxu0 0.0
    %429 = vmatprep.subr.mxu0 0.0
    %430 = vmatpush2.msra.mxu0 0.0
    %431 = vmatprep.subr.mxu0 0.0
    %432 = vmatpush2.msra.mxu0 0.0
    %433 = vmatprep.subr.mxu0 0.0
    %434 = vmatpush2.msra.mxu0 0.0
    %435 = vmatprep.subr.mxu0 0.0
    %436 = vmatpush2.msra.mxu0 0.0
    %437 = vmatprep.subr.mxu0 0.0
    %438 = vmatpush2.msra.mxu0 0.0
    %439 = vmatprep.subr.mxu0 0.0
    %440 = vmatpush2.msra.mxu0 0.0
    %441 = vmatprep.subr.mxu0 0.0
    %442 = vmatpush2.msra.mxu0 0.0
    %443 = vmatprep.subr.mxu0 0.0
    %444 = vmatpush2.msra.mxu0 0.0
    %445 = vmatprep.subr.mxu0 0.0
    %446 = vmatpush2.msra.mxu0 0.0
    %447 = vmatprep.subr.mxu0 0.0
    %448 = vmatpush2.msra.mxu0 0.0
    %449 = vmatprep.subr.mxu0 0.0
    %450 = vmatpush2.msra.mxu0 0.0
    %451 = vmatprep.subr.mxu0 0.0
    %452 = vmatpush2.msra.mxu0 0.0
    %453 = vmatprep.subr.mxu0 0.0
    %454 = vmatpush2.msra.mxu0 0.0
    %455 = vmatprep.mubr.f32.mxu0 0.0
    %456 = vmatmul.mubr.f32.gmra.mxu0 %v387
    %v457 = vpop.f32.mrf.mxu0
    %v458 = vadd.f32 0.0, %v457
    %v459 = vpop.f32.mrf.mxu0
    %460 = vmatprep.mubr.f32.mxu0 0.0
    %461 = vmatmul.mubr.f32.gmra.mxu0 %v389
    %v462 = vpop.f32.mrf.mxu0
    %v463 = vadd.f32 0.0, %v462
    %v464 = vpop.f32.mrf.mxu0
    %465 = vdwg.mxu0
    %466 = vrot.lane.b32.xlu0 %v173, 120
    %v467 = vpop.permute.xlu0 %466
    %468 = vrot.lane.b32.xlu0 %v178, 120
    %v469 = vpop.permute.xlu0 %468
    %470 = vrot.lane.b32.xlu0 %v173, 88
    %v471 = vpop.permute.xlu0 %470
    %472 = vrot.lane.b32.xlu0 %v178, 88
    %v473 = vpop.permute.xlu0 %472
    %v474 = vsel %vm191, %v467, 0
    %v476 = vsel %vm191, %v469, 0
    %v478 = vsel %vm191, %v471, 0
    %v480 = vsel %vm191, %v473, 0
    %482 = vmatprep.subr.mxu0 0.0
    %483 = vmatpush1.xpose.msra.mxu0 0.0
    %484 = vmatprep.subr.mxu0 0.0
    %485 = vmatpush1.xpose.msra.mxu0 0.0
    %486 = vmatprep.subr.mxu0 0.0
    %487 = vmatpush1.xpose.msra.mxu0 0.0
    %488 = vmatprep.subr.mxu0 0.0
    %489 = vmatpush1.xpose.msra.mxu0 0.0
    %490 = vmatprep.subr.mxu0 0.0
    %491 = vmatpush1.xpose.msra.mxu0 0.0
    %492 = vmatprep.subr.mxu0 0.0
    %493 = vmatpush1.xpose.msra.mxu0 0.0
    %494 = vmatprep.subr.mxu0 0.0
    %495 = vmatpush1.xpose.msra.mxu0 0.0
    %496 = vmatprep.subr.mxu0 0.0
    %497 = vmatpush1.xpose.msra.mxu0 0.0
    %498 = vmatprep.subr.mxu0 0.0
    %499 = vmatpush1.xpose.msra.mxu0 0.0
    %500 = vmatprep.subr.mxu0 0.0
    %501 = vmatpush1.xpose.msra.mxu0 0.0
    %502 = vmatprep.subr.mxu0 0.0
    %503 = vmatpush1.xpose.msra.mxu0 0.0
    %504 = vmatprep.subr.mxu0 0.0
    %505 = vmatpush1.xpose.msra.mxu0 0.0
    %506 = vmatprep.subr.mxu0 0.0
    %507 = vmatpush1.xpose.msra.mxu0 0.0
    %508 = vmatprep.subr.mxu0 0.0
    %509 = vmatpush1.xpose.msra.mxu0 0.0
    %510 = vmatprep.subr.mxu0 0.0
    %511 = vmatpush1.xpose.msra.mxu0 %v480
    %512 = vmatprep.subr.mxu0 0.0
    %513 = vmatpush1.xpose.msra.mxu0 %v478
    %514 = vmatprep.subr.mxu0 0.0
    %515 = vmatpush2.xpose.msra.mxu0 0.0
    %516 = vmatprep.subr.mxu0 0.0
    %517 = vmatpush2.xpose.msra.mxu0 0.0
    %518 = vmatprep.subr.mxu0 0.0
    %519 = vmatpush2.xpose.msra.mxu0 0.0
    %520 = vmatprep.subr.mxu0 0.0
    %521 = vmatpush2.xpose.msra.mxu0 0.0
    %522 = vmatprep.subr.mxu0 0.0
    %523 = vmatpush2.xpose.msra.mxu0 0.0
    %524 = vmatprep.subr.mxu0 0.0
    %525 = vmatpush2.xpose.msra.mxu0 0.0
    %526 = vmatprep.subr.mxu0 0.0
    %527 = vmatpush2.xpose.msra.mxu0 0.0
    %528 = vmatprep.subr.mxu0 0.0
    %529 = vmatpush2.xpose.msra.mxu0 0.0
    %530 = vmatprep.subr.mxu0 0.0
    %531 = vmatpush2.xpose.msra.mxu0 0.0
    %532 = vmatprep.subr.mxu0 0.0
    %533 = vmatpush2.xpose.msra.mxu0 0.0
    %534 = vmatprep.subr.mxu0 0.0
    %535 = vmatpush2.xpose.msra.mxu0 0.0
    %536 = vmatprep.subr.mxu0 0.0
    %537 = vmatpush2.xpose.msra.mxu0 0.0
    %538 = vmatprep.subr.mxu0 0.0
    %539 = vmatpush2.xpose.msra.mxu0 0.0
    %540 = vmatprep.subr.mxu0 0.0
    %541 = vmatpush2.xpose.msra.mxu0 0.0
    %542 = vmatprep.subr.mxu0 0.0
    %543 = vmatpush2.xpose.msra.mxu0 0.0
    %544 = vmatprep.subr.mxu0 0.0
    %545 = vmatpush2.xpose.msra.mxu0 0.0
    %546 = vmatprep.mubr.f32.mxu0 0.0
    %547 = vmatmul.mubr.f32.gmra.mxu0 %v474
    %v548 = vpop.f32.mrf.mxu0
    %v549 = vadd.f32 0.0, %v548
    %v550 = vpop.f32.mrf.mxu0
    %551 = vmatprep.mubr.f32.mxu0 0.0
    %552 = vmatmul.mubr.f32.gmra.mxu0 %v476
    %v553 = vpop.f32.mrf.mxu0
    %v554 = vadd.f32 0.0, %v553
    %v555 = vpop.f32.mrf.mxu0
    %556 = vdwg.mxu0
    %v557 = vsel %vm86, %v549, -1e+30
    %v558 = vsel %vm87, %v554, -1e+30
    %v559 = vsel %vm360, %v557, -inf
    %560 = vmax.xlane.f32.xlu0 %v559
    %v561 = vpop.xlane.xlu0 %560
    %v562 = vsel %vm360, %v558, -inf
    %563 = vmax.xlane.f32.xlu0 %v562
    %v564 = vpop.xlane.xlu0 %563
    %v565 = vsub.f32 %v557, %v561
    %v566 = vsub.f32 %v558, %v564
    %v567 = vmul.f32 %v565, 1.442695
    %v568 = vpow.pop %v567
    %v569 = vmul.f32 %v566, 1.442695
    %v570 = vpow.pop %v569
    %v571 = vsel %vm360, %v568, 0.0
    %572 = vadd.xlane.f32.xlu0 %v571
    %v573 = vpop.xlane.xlu0 %572
    %v574 = vsel %vm360, %v570, 0.0
    %575 = vadd.xlane.f32.xlu0 %v574
    %v576 = vpop.xlane.xlu0 %575
    %v577 = vrcp.pop %v573
    %v578 = vrcp.pop %v576
    %v579 = vmul.f32 %v568, %v577
    %v580 = vmul.f32 %v570, %v578
    %v582 = vsel %vm360, %v579, 0
    %v585 = vsel %vm360, %v580, 0
    %587 = vmatprep.subr.mxu0 0.0
    %588 = vmatpush1.msra.mxu0 0.0
    %589 = vmatprep.subr.mxu0 0.0
    %590 = vmatpush1.msra.mxu0 0.0
    %591 = vmatprep.subr.mxu0 0.0
    %592 = vmatpush1.msra.mxu0 0.0
    %593 = vmatprep.subr.mxu0 0.0
    %594 = vmatpush1.msra.mxu0 0.0
    %595 = vmatprep.subr.mxu0 0.0
    %596 = vmatpush1.msra.mxu0 0.0
    %597 = vmatprep.subr.mxu0 0.0
    %598 = vmatpush1.msra.mxu0 0.0
    %599 = vmatprep.subr.mxu0 0.0
    %600 = vmatpush1.msra.mxu0 0.0
    %601 = vmatprep.subr.mxu0 0.0
    %602 = vmatpush1.msra.mxu0 0.0
    %603 = vmatprep.subr.mxu0 0.0
    %604 = vmatpush1.msra.mxu0 0.0
    %605 = vmatprep.subr.mxu0 0.0
    %606 = vmatpush1.msra.mxu0 0.0
    %607 = vmatprep.subr.mxu0 0.0
    %608 = vmatpush1.msra.mxu0 0.0
    %609 = vmatprep.subr.mxu0 0.0
    %610 = vmatpush1.msra.mxu0 0.0
    %611 = vmatprep.subr.mxu0 0.0
    %612 = vmatpush1.msra.mxu0 0.0
    %613 = vmatprep.subr.mxu0 0.0
    %614 = vmatpush1.msra.mxu0 0.0
    %615 = vmatprep.subr.mxu0 0.0
    %616 = vmatpush1.msra.mxu0 %v463
    %617 = vmatprep.subr.mxu0 0.0
    %618 = vmatpush1.msra.mxu0 %v458
    %619 = vmatprep.subr.mxu0 0.0
    %620 = vmatpush2.msra.mxu0 0.0
    %621 = vmatprep.subr.mxu0 0.0
    %622 = vmatpush2.msra.mxu0 0.0
    %623 = vmatprep.subr.mxu0 0.0
    %624 = vmatpush2.msra.mxu0 0.0
    %625 = vmatprep.subr.mxu0 0.0
    %626 = vmatpush2.msra.mxu0 0.0
    %627 = vmatprep.subr.mxu0 0.0
    %628 = vmatpush2.msra.mxu0 0.0
    %629 = vmatprep.subr.mxu0 0.0
    %630 = vmatpush2.msra.mxu0 0.0
    %631 = vmatprep.subr.mxu0 0.0
    %632 = vmatpush2.msra.mxu0 0.0
    %633 = vmatprep.subr.mxu0 0.0
    %634 = vmatpush2.msra.mxu0 0.0
    %635 = vmatprep.subr.mxu0 0.0
    %636 = vmatpush2.msra.mxu0 0.0
    %637 = vmatprep.subr.mxu0 0.0
    %638 = vmatpush2.msra.mxu0 0.0
    %639 = vmatprep.subr.mxu0 0.0
    %640 = vmatpush2.msra.mxu0 0.0
    %641 = vmatprep.subr.mxu0 0.0
    %642 = vmatpush2.msra.mxu0 0.0
    %643 = vmatprep.subr.mxu0 0.0
    %644 = vmatpush2.msra.mxu0 0.0
    %645 = vmatprep.subr.mxu0 0.0
    %646 = vmatpush2.msra.mxu0 0.0
    %647 = vmatprep.subr.mxu0 0.0
    %648 = vmatpush2.msra.mxu0 0.0
    %649 = vmatprep.subr.mxu0 0.0
    %650 = vmatpush2.msra.mxu0 0.0
    %651 = vmatprep.mubr.f32.mxu0 0.0
    %652 = vmatmul.mubr.f32.gmra.mxu0 %v582
    %v653 = vpop.f32.mrf.mxu0
    %v654 = vadd.f32 0.0, %v653
    %v655 = vpop.f32.mrf.mxu0
    %656 = vmatprep.mubr.f32.mxu0 0.0
    %657 = vmatmul.mubr.f32.gmra.mxu0 %v585
    %v658 = vpop.f32.mrf.mxu0
    %v659 = vadd.f32 0.0, %v658
    %v660 = vpop.f32.mrf.mxu0
    %661 = vdwg.mxu0
    %v663 = vsel %vm360, %v381, 0
    %v666 = vsel %vm360, %v382, 0
    %668 = vmatprep.subr.mxu0 0.0
    %669 = vmatpush1.msra.mxu0 0.0
    %670 = vmatprep.subr.mxu0 0.0
    %671 = vmatpush1.msra.mxu0 0.0
    %672 = vmatprep.subr.mxu0 0.0
    %673 = vmatpush1.msra.mxu0 0.0
    %674 = vmatprep.subr.mxu0 0.0
    %675 = vmatpush1.msra.mxu0 0.0
    %676 = vmatprep.subr.mxu0 0.0
    %677 = vmatpush1.msra.mxu0 0.0
    %678 = vmatprep.subr.mxu0 0.0
    %679 = vmatpush1.msra.mxu0 0.0
    %680 = vmatprep.subr.mxu0 0.0
    %681 = vmatpush1.msra.mxu0 0.0
    %682 = vmatprep.subr.mxu0 0.0
    %683 = vmatpush1.msra.mxu0 0.0
    %684 = vmatprep.subr.mxu0 0.0
    %685 = vmatpush1.msra.mxu0 0.0
    %686 = vmatprep.subr.mxu0 0.0
    %687 = vmatpush1.msra.mxu0 0.0
    %688 = vmatprep.subr.mxu0 0.0
    %689 = vmatpush1.msra.mxu0 0.0
    %690 = vmatprep.subr.mxu0 0.0
    %691 = vmatpush1.msra.mxu0 0.0
    %692 = vmatprep.subr.mxu0 0.0
    %693 = vmatpush1.msra.mxu0 0.0
    %694 = vmatprep.subr.mxu0 0.0
    %695 = vmatpush1.msra.mxu0 0.0
    %696 = vmatprep.subr.mxu0 0.0
    %697 = vmatpush1.msra.mxu0 %v268
    %698 = vmatprep.subr.mxu0 0.0
    %699 = vmatpush1.msra.mxu0 %v263
    %700 = vmatprep.subr.mxu0 0.0
    %701 = vmatpush2.msra.mxu0 0.0
    %702 = vmatprep.subr.mxu0 0.0
    %703 = vmatpush2.msra.mxu0 0.0
    %704 = vmatprep.subr.mxu0 0.0
    %705 = vmatpush2.msra.mxu0 0.0
    %706 = vmatprep.subr.mxu0 0.0
    %707 = vmatpush2.msra.mxu0 0.0
    %708 = vmatprep.subr.mxu0 0.0
    %709 = vmatpush2.msra.mxu0 0.0
    %710 = vmatprep.subr.mxu0 0.0
    %711 = vmatpush2.msra.mxu0 0.0
    %712 = vmatprep.subr.mxu0 0.0
    %713 = vmatpush2.msra.mxu0 0.0
    %714 = vmatprep.subr.mxu0 0.0
    %715 = vmatpush2.msra.mxu0 0.0
    %716 = vmatprep.subr.mxu0 0.0
    %717 = vmatpush2.msra.mxu0 0.0
    %718 = vmatprep.subr.mxu0 0.0
    %719 = vmatpush2.msra.mxu0 0.0
    %720 = vmatprep.subr.mxu0 0.0
    %721 = vmatpush2.msra.mxu0 0.0
    %722 = vmatprep.subr.mxu0 0.0
    %723 = vmatpush2.msra.mxu0 0.0
    %724 = vmatprep.subr.mxu0 0.0
    %725 = vmatpush2.msra.mxu0 0.0
    %726 = vmatprep.subr.mxu0 0.0
    %727 = vmatpush2.msra.mxu0 0.0
    %728 = vmatprep.subr.mxu0 0.0
    %729 = vmatpush2.msra.mxu0 0.0
    %730 = vmatprep.subr.mxu0 0.0
    %731 = vmatpush2.msra.mxu0 0.0
    %732 = vmatprep.mubr.f32.mxu0 0.0
    %733 = vmatmul.mubr.f32.gmra.mxu0 %v663
    %v734 = vpop.f32.mrf.mxu0
    %v735 = vadd.f32 %v654, %v734
    %v736 = vpop.f32.mrf.mxu0
    %737 = vmatprep.mubr.f32.mxu0 0.0
    %738 = vmatmul.mubr.f32.gmra.mxu0 %v666
    %v739 = vpop.f32.mrf.mxu0
    %v740 = vadd.f32 %v659, %v739
    %v741 = vpop.f32.mrf.mxu0
    %742 = vdwg.mxu0
    %743 = vrot.lane.b32.xlu0 %v173, 48
    %v744 = vpop.permute.xlu0 %743
    %745 = vrot.lane.b32.xlu0 %v178, 48
    %v746 = vpop.permute.xlu0 %745
    %v747 = vsel %vm191, %v744, 0
    %v749 = vsel %vm191, %v746, 0
    %751 = vmatprep.subr.mxu0 0.0
    %752 = vmatpush1.msra.mxu0 0.0
    %753 = vmatprep.subr.mxu0 0.0
    %754 = vmatpush1.msra.mxu0 0.0
    %755 = vmatprep.subr.mxu0 0.0
    %756 = vmatpush1.msra.mxu0 0.0
    %757 = vmatprep.subr.mxu0 0.0
    %758 = vmatpush1.msra.mxu0 0.0
    %759 = vmatprep.subr.mxu0 0.0
    %760 = vmatpush1.msra.mxu0 0.0
    %761 = vmatprep.subr.mxu0 0.0
    %762 = vmatpush1.msra.mxu0 0.0
    %763 = vmatprep.subr.mxu0 0.0
    %764 = vmatpush1.msra.mxu0 0.0
    %765 = vmatprep.subr.mxu0 0.0
    %766 = vmatpush1.msra.mxu0 0.0
    %767 = vmatprep.subr.mxu0 0.0
    %768 = vmatpush1.msra.mxu0 0.0
    %769 = vmatprep.subr.mxu0 0.0
    %770 = vmatpush1.msra.mxu0 0.0
    %771 = vmatprep.subr.mxu0 0.0
    %772 = vmatpush1.msra.mxu0 0.0
    %773 = vmatprep.subr.mxu0 0.0
    %774 = vmatpush1.msra.mxu0 0.0
    %775 = vmatprep.subr.mxu0 0.0
    %776 = vmatpush1.msra.mxu0 0.0
    %777 = vmatprep.subr.mxu0 0.0
    %778 = vmatpush1.msra.mxu0 0.0
    %779 = vmatprep.subr.mxu0 0.0
    %780 = vmatpush1.msra.mxu0 0.0
    %781 = vmatprep.subr.mxu0 0.0
    %782 = vmatpush1.msra.mxu0 %v183
    %783 = vmatprep.subr.mxu0 0.0
    %784 = vmatpush2.msra.mxu0 0.0
    %785 = vmatprep.subr.mxu0 0.0
    %786 = vmatpush2.msra.mxu0 0.0
    %787 = vmatprep.subr.mxu0 0.0
    %788 = vmatpush2.msra.mxu0 0.0
    %789 = vmatprep.subr.mxu0 0.0
    %790 = vmatpush2.msra.mxu0 0.0
    %791 = vmatprep.subr.mxu0 0.0
    %792 = vmatpush2.msra.mxu0 0.0
    %793 = vmatprep.subr.mxu0 0.0
    %794 = vmatpush2.msra.mxu0 0.0
    %795 = vmatprep.subr.mxu0 0.0
    %796 = vmatpush2.msra.mxu0 0.0
    %797 = vmatprep.subr.mxu0 0.0
    %798 = vmatpush2.msra.mxu0 0.0
    %799 = vmatprep.subr.mxu0 0.0
    %800 = vmatpush2.msra.mxu0 0.0
    %801 = vmatprep.subr.mxu0 0.0
    %802 = vmatpush2.msra.mxu0 0.0
    %803 = vmatprep.subr.mxu0 0.0
    %804 = vmatpush2.msra.mxu0 0.0
    %805 = vmatprep.subr.mxu0 0.0
    %806 = vmatpush2.msra.mxu0 0.0
    %807 = vmatprep.subr.mxu0 0.0
    %808 = vmatpush2.msra.mxu0 0.0
    %809 = vmatprep.subr.mxu0 0.0
    %810 = vmatpush2.msra.mxu0 0.0
    %811 = vmatprep.subr.mxu0 0.0
    %812 = vmatpush2.msra.mxu0 0.0
    %813 = vmatprep.subr.mxu0 0.0
    %814 = vmatpush2.msra.mxu0 0.0
    %815 = vmatprep.mubr.f32.mxu0 0.0
    %816 = vmatmul.mubr.f32.gmra.mxu0 %v747
    %v817 = vpop.f32.mrf.mxu0
    %v818 = vadd.f32 0.0, %v817
    %v819 = vpop.f32.mrf.mxu0
    %820 = vmatprep.mubr.f32.mxu0 0.0
    %821 = vmatmul.mubr.f32.gmra.mxu0 %v749
    %v822 = vpop.f32.mrf.mxu0
    %v823 = vadd.f32 0.0, %v822
    %v824 = vpop.f32.mrf.mxu0
    %825 = vdwg.mxu0
    %826 = vrot.lane.b32.xlu0 %v173, 112
    %v827 = vpop.permute.xlu0 %826
    %828 = vrot.lane.b32.xlu0 %v178, 112
    %v829 = vpop.permute.xlu0 %828
    %830 = vrot.lane.b32.xlu0 %v173, 80
    %v831 = vpop.permute.xlu0 %830
    %832 = vrot.lane.b32.xlu0 %v178, 80
    %v833 = vpop.permute.xlu0 %832
    %v834 = vsel %vm191, %v827, 0
    %v836 = vsel %vm191, %v829, 0
    %v838 = vsel %vm191, %v831, 0
    %v840 = vsel %vm191, %v833, 0
    %842 = vmatprep.subr.mxu0 0.0
    %843 = vmatpush1.xpose.msra.mxu0 0.0
    %844 = vmatprep.subr.mxu0 0.0
    %845 = vmatpush1.xpose.msra.mxu0 0.0
    %846 = vmatprep.subr.mxu0 0.0
    %847 = vmatpush1.xpose.msra.mxu0 0.0
    %848 = vmatprep.subr.mxu0 0.0
    %849 = vmatpush1.xpose.msra.mxu0 0.0
    %850 = vmatprep.subr.mxu0 0.0
    %851 = vmatpush1.xpose.msra.mxu0 0.0
    %852 = vmatprep.subr.mxu0 0.0
    %853 = vmatpush1.xpose.msra.mxu0 0.0
    %854 = vmatprep.subr.mxu0 0.0
    %855 = vmatpush1.xpose.msra.mxu0 0.0
    %856 = vmatprep.subr.mxu0 0.0
    %857 = vmatpush1.xpose.msra.mxu0 0.0
    %858 = vmatprep.subr.mxu0 0.0
    %859 = vmatpush1.xpose.msra.mxu0 0.0
    %860 = vmatprep.subr.mxu0 0.0
    %861 = vmatpush1.xpose.msra.mxu0 0.0
    %862 = vmatprep.subr.mxu0 0.0
    %863 = vmatpush1.xpose.msra.mxu0 0.0
    %864 = vmatprep.subr.mxu0 0.0
    %865 = vmatpush1.xpose.msra.mxu0 0.0
    %866 = vmatprep.subr.mxu0 0.0
    %867 = vmatpush1.xpose.msra.mxu0 0.0
    %868 = vmatprep.subr.mxu0 0.0
    %869 = vmatpush1.xpose.msra.mxu0 0.0
    %870 = vmatprep.subr.mxu0 0.0
    %871 = vmatpush1.xpose.msra.mxu0 %v840
    %872 = vmatprep.subr.mxu0 0.0
    %873 = vmatpush1.xpose.msra.mxu0 %v838
    %874 = vmatprep.subr.mxu0 0.0
    %875 = vmatpush2.xpose.msra.mxu0 0.0
    %876 = vmatprep.subr.mxu0 0.0
    %877 = vmatpush2.xpose.msra.mxu0 0.0
    %878 = vmatprep.subr.mxu0 0.0
    %879 = vmatpush2.xpose.msra.mxu0 0.0
    %880 = vmatprep.subr.mxu0 0.0
    %881 = vmatpush2.xpose.msra.mxu0 0.0
    %882 = vmatprep.subr.mxu0 0.0
    %883 = vmatpush2.xpose.msra.mxu0 0.0
    %884 = vmatprep.subr.mxu0 0.0
    %885 = vmatpush2.xpose.msra.mxu0 0.0
    %886 = vmatprep.subr.mxu0 0.0
    %887 = vmatpush2.xpose.msra.mxu0 0.0
    %888 = vmatprep.subr.mxu0 0.0
    %889 = vmatpush2.xpose.msra.mxu0 0.0
    %890 = vmatprep.subr.mxu0 0.0
    %891 = vmatpush2.xpose.msra.mxu0 0.0
    %892 = vmatprep.subr.mxu0 0.0
    %893 = vmatpush2.xpose.msra.mxu0 0.0
    %894 = vmatprep.subr.mxu0 0.0
    %895 = vmatpush2.xpose.msra.mxu0 0.0
    %896 = vmatprep.subr.mxu0 0.0
    %897 = vmatpush2.xpose.msra.mxu0 0.0
    %898 = vmatprep.subr.mxu0 0.0
    %899 = vmatpush2.xpose.msra.mxu0 0.0
    %900 = vmatprep.subr.mxu0 0.0
    %901 = vmatpush2.xpose.msra.mxu0 0.0
    %902 = vmatprep.subr.mxu0 0.0
    %903 = vmatpush2.xpose.msra.mxu0 0.0
    %904 = vmatprep.subr.mxu0 0.0
    %905 = vmatpush2.xpose.msra.mxu0 0.0
    %906 = vmatprep.mubr.f32.mxu0 0.0
    %907 = vmatmul.mubr.f32.gmra.mxu0 %v834
    %v908 = vpop.f32.mrf.mxu0
    %v909 = vadd.f32 0.0, %v908
    %v910 = vpop.f32.mrf.mxu0
    %911 = vmatprep.mubr.f32.mxu0 0.0
    %912 = vmatmul.mubr.f32.gmra.mxu0 %v836
    %v913 = vpop.f32.mrf.mxu0
    %v914 = vadd.f32 0.0, %v913
    %v915 = vpop.f32.mrf.mxu0
    %916 = vdwg.mxu0
    %v917 = vsel %vm86, %v909, -1e+30
    %v918 = vsel %vm87, %v914, -1e+30
    %v919 = vsel %vm360, %v917, -inf
    %920 = vmax.xlane.f32.xlu0 %v919
    %v921 = vpop.xlane.xlu0 %920
    %v922 = vsel %vm360, %v918, -inf
    %923 = vmax.xlane.f32.xlu0 %v922
    %v924 = vpop.xlane.xlu0 %923
    %v925 = vsub.f32 %v917, %v921
    %v926 = vsub.f32 %v918, %v924
    %v927 = vmul.f32 %v925, 1.442695
    %v928 = vpow.pop %v927
    %v929 = vmul.f32 %v926, 1.442695
    %v930 = vpow.pop %v929
    %v931 = vsel %vm360, %v928, 0.0
    %932 = vadd.xlane.f32.xlu0 %v931
    %v933 = vpop.xlane.xlu0 %932
    %v934 = vsel %vm360, %v930, 0.0
    %935 = vadd.xlane.f32.xlu0 %v934
    %v936 = vpop.xlane.xlu0 %935
    %v937 = vrcp.pop %v933
    %v938 = vrcp.pop %v936
    %v939 = vmul.f32 %v928, %v937
    %v940 = vmul.f32 %v930, %v938
    %v942 = vsel %vm360, %v939, 0
    %v945 = vsel %vm360, %v940, 0
    %947 = vmatprep.subr.mxu0 0.0
    %948 = vmatpush1.msra.mxu0 0.0
    %949 = vmatprep.subr.mxu0 0.0
    %950 = vmatpush1.msra.mxu0 0.0
    %951 = vmatprep.subr.mxu0 0.0
    %952 = vmatpush1.msra.mxu0 0.0
    %953 = vmatprep.subr.mxu0 0.0
    %954 = vmatpush1.msra.mxu0 0.0
    %955 = vmatprep.subr.mxu0 0.0
    %956 = vmatpush1.msra.mxu0 0.0
    %957 = vmatprep.subr.mxu0 0.0
    %958 = vmatpush1.msra.mxu0 0.0
    %959 = vmatprep.subr.mxu0 0.0
    %960 = vmatpush1.msra.mxu0 0.0
    %961 = vmatprep.subr.mxu0 0.0
    %962 = vmatpush1.msra.mxu0 0.0
    %963 = vmatprep.subr.mxu0 0.0
    %964 = vmatpush1.msra.mxu0 0.0
    %965 = vmatprep.subr.mxu0 0.0
    %966 = vmatpush1.msra.mxu0 0.0
    %967 = vmatprep.subr.mxu0 0.0
    %968 = vmatpush1.msra.mxu0 0.0
    %969 = vmatprep.subr.mxu0 0.0
    %970 = vmatpush1.msra.mxu0 0.0
    %971 = vmatprep.subr.mxu0 0.0
    %972 = vmatpush1.msra.mxu0 0.0
    %973 = vmatprep.subr.mxu0 0.0
    %974 = vmatpush1.msra.mxu0 0.0
    %975 = vmatprep.subr.mxu0 0.0
    %976 = vmatpush1.msra.mxu0 %v823
    %977 = vmatprep.subr.mxu0 0.0
    %978 = vmatpush1.msra.mxu0 %v818
    %979 = vmatprep.subr.mxu0 0.0
    %980 = vmatpush2.msra.mxu0 0.0
    %981 = vmatprep.subr.mxu0 0.0
    %982 = vmatpush2.msra.mxu0 0.0
    %983 = vmatprep.subr.mxu0 0.0
    %984 = vmatpush2.msra.mxu0 0.0
    %985 = vmatprep.subr.mxu0 0.0
    %986 = vmatpush2.msra.mxu0 0.0
    %987 = vmatprep.subr.mxu0 0.0
    %988 = vmatpush2.msra.mxu0 0.0
    %989 = vmatprep.subr.mxu0 0.0
    %990 = vmatpush2.msra.mxu0 0.0
    %991 = vmatprep.subr.mxu0 0.0
    %992 = vmatpush2.msra.mxu0 0.0
    %993 = vmatprep.subr.mxu0 0.0
    %994 = vmatpush2.msra.mxu0 0.0
    %995 = vmatprep.subr.mxu0 0.0
    %996 = vmatpush2.msra.mxu0 0.0
    %997 = vmatprep.subr.mxu0 0.0
    %998 = vmatpush2.msra.mxu0 0.0
    %999 = vmatprep.subr.mxu0 0.0
    %1000 = vmatpush2.msra.mxu0 0.0
    %1001 = vmatprep.subr.mxu0 0.0
    %1002 = vmatpush2.msra.mxu0 0.0
    %1003 = vmatprep.subr.mxu0 0.0
    %1004 = vmatpush2.msra.mxu0 0.0
    %1005 = vmatprep.subr.mxu0 0.0
    %1006 = vmatpush2.msra.mxu0 0.0
    %1007 = vmatprep.subr.mxu0 0.0
    %1008 = vmatpush2.msra.mxu0 0.0
    %1009 = vmatprep.subr.mxu0 0.0
    %1010 = vmatpush2.msra.mxu0 0.0
    %1011 = vmatprep.mubr.f32.mxu0 0.0
    %1012 = vmatmul.mubr.f32.gmra.mxu0 %v942
    %v1013 = vpop.f32.mrf.mxu0
    %v1014 = vadd.f32 0.0, %v1013
    %v1015 = vpop.f32.mrf.mxu0
    %1016 = vmatprep.mubr.f32.mxu0 0.0
    %1017 = vmatmul.mubr.f32.gmra.mxu0 %v945
    %v1018 = vpop.f32.mrf.mxu0
    %v1019 = vadd.f32 0.0, %v1018
    %v1020 = vpop.f32.mrf.mxu0
    %1021 = vdwg.mxu0
    %v1022 = vadd.f32 %v735, %v1014
    %v1023 = vadd.f32 %v740, %v1019
    %1024 = vrot.lane.b32.xlu0 %v173, 40
    %v1025 = vpop.permute.xlu0 %1024
    %1026 = vrot.lane.b32.xlu0 %v178, 40
    %v1027 = vpop.permute.xlu0 %1026
    %v1028 = vsel %vm191, %v1025, 0
    %v1030 = vsel %vm191, %v1027, 0
    %1032 = vmatprep.subr.mxu0 0.0
    %1033 = vmatpush1.msra.mxu0 0.0
    %1034 = vmatprep.subr.mxu0 0.0
    %1035 = vmatpush1.msra.mxu0 0.0
    %1036 = vmatprep.subr.mxu0 0.0
    %1037 = vmatpush1.msra.mxu0 0.0
    %1038 = vmatprep.subr.mxu0 0.0
    %1039 = vmatpush1.msra.mxu0 0.0
    %1040 = vmatprep.subr.mxu0 0.0
    %1041 = vmatpush1.msra.mxu0 0.0
    %1042 = vmatprep.subr.mxu0 0.0
    %1043 = vmatpush1.msra.mxu0 0.0
    %1044 = vmatprep.subr.mxu0 0.0
    %1045 = vmatpush1.msra.mxu0 0.0
    %1046 = vmatprep.subr.mxu0 0.0
    %1047 = vmatpush1.msra.mxu0 0.0
    %1048 = vmatprep.subr.mxu0 0.0
    %1049 = vmatpush1.msra.mxu0 0.0
    %1050 = vmatprep.subr.mxu0 0.0
    %1051 = vmatpush1.msra.mxu0 0.0
    %1052 = vmatprep.subr.mxu0 0.0
    %1053 = vmatpush1.msra.mxu0 0.0
    %1054 = vmatprep.subr.mxu0 0.0
    %1055 = vmatpush1.msra.mxu0 0.0
    %1056 = vmatprep.subr.mxu0 0.0
    %1057 = vmatpush1.msra.mxu0 0.0
    %1058 = vmatprep.subr.mxu0 0.0
    %1059 = vmatpush1.msra.mxu0 0.0
    %1060 = vmatprep.subr.mxu0 0.0
    %1061 = vmatpush1.msra.mxu0 0.0
    %1062 = vmatprep.subr.mxu0 0.0
    %1063 = vmatpush1.msra.mxu0 %v184
    %1064 = vmatprep.subr.mxu0 0.0
    %1065 = vmatpush2.msra.mxu0 0.0
    %1066 = vmatprep.subr.mxu0 0.0
    %1067 = vmatpush2.msra.mxu0 0.0
    %1068 = vmatprep.subr.mxu0 0.0
    %1069 = vmatpush2.msra.mxu0 0.0
    %1070 = vmatprep.subr.mxu0 0.0
    %1071 = vmatpush2.msra.mxu0 0.0
    %1072 = vmatprep.subr.mxu0 0.0
    %1073 = vmatpush2.msra.mxu0 0.0
    %1074 = vmatprep.subr.mxu0 0.0
    %1075 = vmatpush2.msra.mxu0 0.0
    %1076 = vmatprep.subr.mxu0 0.0
    %1077 = vmatpush2.msra.mxu0 0.0
    %1078 = vmatprep.subr.mxu0 0.0
    %1079 = vmatpush2.msra.mxu0 0.0
    %1080 = vmatprep.subr.mxu0 0.0
    %1081 = vmatpush2.msra.mxu0 0.0
    %1082 = vmatprep.subr.mxu0 0.0
    %1083 = vmatpush2.msra.mxu0 0.0
    %1084 = vmatprep.subr.mxu0 0.0
    %1085 = vmatpush2.msra.mxu0 0.0
    %1086 = vmatprep.subr.mxu0 0.0
    %1087 = vmatpush2.msra.mxu0 0.0
    %1088 = vmatprep.subr.mxu0 0.0
    %1089 = vmatpush2.msra.mxu0 0.0
    %1090 = vmatprep.subr.mxu0 0.0
    %1091 = vmatpush2.msra.mxu0 0.0
    %1092 = vmatprep.subr.mxu0 0.0
    %1093 = vmatpush2.msra.mxu0 0.0
    %1094 = vmatprep.subr.mxu0 0.0
    %1095 = vmatpush2.msra.mxu0 0.0
    %1096 = vmatprep.mubr.f32.mxu0 0.0
    %1097 = vmatmul.mubr.f32.gmra.mxu0 %v1028
    %v1098 = vpop.f32.mrf.mxu0
    %v1099 = vadd.f32 0.0, %v1098
    %v1100 = vpop.f32.mrf.mxu0
    %1101 = vmatprep.mubr.f32.mxu0 0.0
    %1102 = vmatmul.mubr.f32.gmra.mxu0 %v1030
    %v1103 = vpop.f32.mrf.mxu0
    %v1104 = vadd.f32 0.0, %v1103
    %v1105 = vpop.f32.mrf.mxu0
    %1106 = vdwg.mxu0
    %1107 = vrot.lane.b32.xlu0 %v173, 104
    %v1108 = vpop.permute.xlu0 %1107
    %1109 = vrot.lane.b32.xlu0 %v178, 104
    %v1110 = vpop.permute.xlu0 %1109
    %1111 = vrot.lane.b32.xlu0 %v173, 72
    %v1112 = vpop.permute.xlu0 %1111
    %1113 = vrot.lane.b32.xlu0 %v178, 72
    %v1114 = vpop.permute.xlu0 %1113
    %v1115 = vsel %vm191, %v1108, 0
    %v1117 = vsel %vm191, %v1110, 0
    %v1119 = vsel %vm191, %v1112, 0
    %v1121 = vsel %vm191, %v1114, 0
    %1123 = vmatprep.subr.mxu0 0.0
    %1124 = vmatpush1.xpose.msra.mxu0 0.0
    %1125 = vmatprep.subr.mxu0 0.0
    %1126 = vmatpush1.xpose.msra.mxu0 0.0
    %1127 = vmatprep.subr.mxu0 0.0
    %1128 = vmatpush1.xpose.msra.mxu0 0.0
    %1129 = vmatprep.subr.mxu0 0.0
    %1130 = vmatpush1.xpose.msra.mxu0 0.0
    %1131 = vmatprep.subr.mxu0 0.0
    %1132 = vmatpush1.xpose.msra.mxu0 0.0
    %1133 = vmatprep.subr.mxu0 0.0
    %1134 = vmatpush1.xpose.msra.mxu0 0.0
    %1135 = vmatprep.subr.mxu0 0.0
    %1136 = vmatpush1.xpose.msra.mxu0 0.0
    %1137 = vmatprep.subr.mxu0 0.0
    %1138 = vmatpush1.xpose.msra.mxu0 0.0
    %1139 = vmatprep.subr.mxu0 0.0
    %1140 = vmatpush1.xpose.msra.mxu0 0.0
    %1141 = vmatprep.subr.mxu0 0.0
    %1142 = vmatpush1.xpose.msra.mxu0 0.0
    %1143 = vmatprep.subr.mxu0 0.0
    %1144 = vmatpush1.xpose.msra.mxu0 0.0
    %1145 = vmatprep.subr.mxu0 0.0
    %1146 = vmatpush1.xpose.msra.mxu0 0.0
    %1147 = vmatprep.subr.mxu0 0.0
    %1148 = vmatpush1.xpose.msra.mxu0 0.0
    %1149 = vmatprep.subr.mxu0 0.0
    %1150 = vmatpush1.xpose.msra.mxu0 0.0
    %1151 = vmatprep.subr.mxu0 0.0
    %1152 = vmatpush1.xpose.msra.mxu0 %v1121
    %1153 = vmatprep.subr.mxu0 0.0
    %1154 = vmatpush1.xpose.msra.mxu0 %v1119
    %1155 = vmatprep.subr.mxu0 0.0
    %1156 = vmatpush2.xpose.msra.mxu0 0.0
    %1157 = vmatprep.subr.mxu0 0.0
    %1158 = vmatpush2.xpose.msra.mxu0 0.0
    %1159 = vmatprep.subr.mxu0 0.0
    %1160 = vmatpush2.xpose.msra.mxu0 0.0
    %1161 = vmatprep.subr.mxu0 0.0
    %1162 = vmatpush2.xpose.msra.mxu0 0.0
    %1163 = vmatprep.subr.mxu0 0.0
    %1164 = vmatpush2.xpose.msra.mxu0 0.0
    %1165 = vmatprep.subr.mxu0 0.0
    %1166 = vmatpush2.xpose.msra.mxu0 0.0
    %1167 = vmatprep.subr.mxu0 0.0
    %1168 = vmatpush2.xpose.msra.mxu0 0.0
    %1169 = vmatprep.subr.mxu0 0.0
    %1170 = vmatpush2.xpose.msra.mxu0 0.0
    %1171 = vmatprep.subr.mxu0 0.0
    %1172 = vmatpush2.xpose.msra.mxu0 0.0
    %1173 = vmatprep.subr.mxu0 0.0
    %1174 = vmatpush2.xpose.msra.mxu0 0.0
    %1175 = vmatprep.subr.mxu0 0.0
    %1176 = vmatpush2.xpose.msra.mxu0 0.0
    %1177 = vmatprep.subr.mxu0 0.0
    %1178 = vmatpush2.xpose.msra.mxu0 0.0
    %1179 = vmatprep.subr.mxu0 0.0
    %1180 = vmatpush2.xpose.msra.mxu0 0.0
    %1181 = vmatprep.subr.mxu0 0.0
    %1182 = vmatpush2.xpose.msra.mxu0 0.0
    %1183 = vmatprep.subr.mxu0 0.0
    %1184 = vmatpush2.xpose.msra.mxu0 0.0
    %1185 = vmatprep.subr.mxu0 0.0
    %1186 = vmatpush2.xpose.msra.mxu0 0.0
    %1187 = vmatprep.mubr.f32.mxu0 0.0
    %1188 = vmatmul.mubr.f32.gmra.mxu0 %v1115
    %v1189 = vpop.f32.mrf.mxu0
    %v1190 = vadd.f32 0.0, %v1189
    %v1191 = vpop.f32.mrf.mxu0
    %1192 = vmatprep.mubr.f32.mxu0 0.0
    %1193 = vmatmul.mubr.f32.gmra.mxu0 %v1117
    %v1194 = vpop.f32.mrf.mxu0
    %v1195 = vadd.f32 0.0, %v1194
    %v1196 = vpop.f32.mrf.mxu0
    %1197 = vdwg.mxu0
    %v1198 = vsel %vm86, %v1190, -1e+30
    %v1199 = vsel %vm87, %v1195, -1e+30
    %v1200 = vsel %vm360, %v1198, -inf
    %1201 = vmax.xlane.f32.xlu0 %v1200
    %v1202 = vpop.xlane.xlu0 %1201
    %v1203 = vsel %vm360, %v1199, -inf
    %1204 = vmax.xlane.f32.xlu0 %v1203
    %v1205 = vpop.xlane.xlu0 %1204
    %v1206 = vsub.f32 %v1198, %v1202
    %v1207 = vsub.f32 %v1199, %v1205
    %v1208 = vmul.f32 %v1206, 1.442695
    %v1209 = vpow.pop %v1208
    %v1210 = vmul.f32 %v1207, 1.442695
    %v1211 = vpow.pop %v1210
    %v1212 = vsel %vm360, %v1209, 0.0
    %1213 = vadd.xlane.f32.xlu0 %v1212
    %v1214 = vpop.xlane.xlu0 %1213
    %v1215 = vsel %vm360, %v1211, 0.0
    %1216 = vadd.xlane.f32.xlu0 %v1215
    %v1217 = vpop.xlane.xlu0 %1216
    %v1218 = vrcp.pop %v1214
    %v1219 = vrcp.pop %v1217
    %v1220 = vmul.f32 %v1209, %v1218
    %v1221 = vmul.f32 %v1211, %v1219
    %v1223 = vsel %vm360, %v1220, 0
    %v1226 = vsel %vm360, %v1221, 0
    %1228 = vmatprep.subr.mxu0 0.0
    %1229 = vmatpush1.msra.mxu0 0.0
    %1230 = vmatprep.subr.mxu0 0.0
    %1231 = vmatpush1.msra.mxu0 0.0
    %1232 = vmatprep.subr.mxu0 0.0
    %1233 = vmatpush1.msra.mxu0 0.0
    %1234 = vmatprep.subr.mxu0 0.0
    %1235 = vmatpush1.msra.mxu0 0.0
    %1236 = vmatprep.subr.mxu0 0.0
    %1237 = vmatpush1.msra.mxu0 0.0
    %1238 = vmatprep.subr.mxu0 0.0
    %1239 = vmatpush1.msra.mxu0 0.0
    %1240 = vmatprep.subr.mxu0 0.0
    %1241 = vmatpush1.msra.mxu0 0.0
    %1242 = vmatprep.subr.mxu0 0.0
    %1243 = vmatpush1.msra.mxu0 0.0
    %1244 = vmatprep.subr.mxu0 0.0
    %1245 = vmatpush1.msra.mxu0 0.0
    %1246 = vmatprep.subr.mxu0 0.0
    %1247 = vmatpush1.msra.mxu0 0.0
    %1248 = vmatprep.subr.mxu0 0.0
    %1249 = vmatpush1.msra.mxu0 0.0
    %1250 = vmatprep.subr.mxu0 0.0
    %1251 = vmatpush1.msra.mxu0 0.0
    %1252 = vmatprep.subr.mxu0 0.0
    %1253 = vmatpush1.msra.mxu0 0.0
    %1254 = vmatprep.subr.mxu0 0.0
    %1255 = vmatpush1.msra.mxu0 0.0
    %1256 = vmatprep.subr.mxu0 0.0
    %1257 = vmatpush1.msra.mxu0 %v1104
    %1258 = vmatprep.subr.mxu0 0.0
    %1259 = vmatpush1.msra.mxu0 %v1099
    %1260 = vmatprep.subr.mxu0 0.0
    %1261 = vmatpush2.msra.mxu0 0.0
    %1262 = vmatprep.subr.mxu0 0.0
    %1263 = vmatpush2.msra.mxu0 0.0
    %1264 = vmatprep.subr.mxu0 0.0
    %1265 = vmatpush2.msra.mxu0 0.0
    %1266 = vmatprep.subr.mxu0 0.0
    %1267 = vmatpush2.msra.mxu0 0.0
    %1268 = vmatprep.subr.mxu0 0.0
    %1269 = vmatpush2.msra.mxu0 0.0
    %1270 = vmatprep.subr.mxu0 0.0
    %1271 = vmatpush2.msra.mxu0 0.0
    %1272 = vmatprep.subr.mxu0 0.0
    %1273 = vmatpush2.msra.mxu0 0.0
    %1274 = vmatprep.subr.mxu0 0.0
    %1275 = vmatpush2.msra.mxu0 0.0
    %1276 = vmatprep.subr.mxu0 0.0
    %1277 = vmatpush2.msra.mxu0 0.0
    %1278 = vmatprep.subr.mxu0 0.0
    %1279 = vmatpush2.msra.mxu0 0.0
    %1280 = vmatprep.subr.mxu0 0.0
    %1281 = vmatpush2.msra.mxu0 0.0
    %1282 = vmatprep.subr.mxu0 0.0
    %1283 = vmatpush2.msra.mxu0 0.0
    %1284 = vmatprep.subr.mxu0 0.0
    %1285 = vmatpush2.msra.mxu0 0.0
    %1286 = vmatprep.subr.mxu0 0.0
    %1287 = vmatpush2.msra.mxu0 0.0
    %1288 = vmatprep.subr.mxu0 0.0
    %1289 = vmatpush2.msra.mxu0 0.0
    %1290 = vmatprep.subr.mxu0 0.0
    %1291 = vmatpush2.msra.mxu0 0.0
    %1292 = vmatprep.mubr.f32.mxu0 0.0
    %1293 = vmatmul.mubr.f32.gmra.mxu0 %v1223
    %v1294 = vpop.f32.mrf.mxu0
    %v1295 = vadd.f32 0.0, %v1294
    %v1296 = vpop.f32.mrf.mxu0
    %1297 = vmatprep.mubr.f32.mxu0 0.0
    %1298 = vmatmul.mubr.f32.gmra.mxu0 %v1226
    %v1299 = vpop.f32.mrf.mxu0
    %v1300 = vadd.f32 0.0, %v1299
    %v1301 = vpop.f32.mrf.mxu0
    %1302 = vdwg.mxu0
    %v1303 = vadd.f32 %v1022, %v1295
    %v1304 = vadd.f32 %v1023, %v1300
    %v1305 = vld [vmem:[%s6] sm:$0x1]
    %v1307 = vlaneseq
    %v1308 = vshrl.u32 %v1307, 7
    %v1309 = vsub.s32 0, %v1308
    %v1310 = vrot.slane %v1305, %v1309
    %v1312 = vadd.f32 %v1303, %v1310
    %v1313 = vadd.f32 %v1304, %v1310
    %v1314 = vadd.f32 %v1312, %v71
    %v1315 = vadd.f32 %v1313, %v72
    %vm1316 = vcmp.ge.s32.totalorder %v73, 0
    %vm1317 = vcmp.ge.s32.totalorder %v74, 0
    %v1318 = vsel %vm1316, 1, 0
    %v1319 = vsel %vm1317, 1, 0
    %v1320 = vcvt.s32.f32 %v1318
    %v1321 = vcvt.s32.f32 %v1319
    %1323 = vset.pattern.permute.xlu0 0
    %1324 = vperm.xlu0 %1323, %v1320
    %v1325 = vpop.permute.xlu0 %1324
    %1328 = vset.pattern.permute.xlu0 0
    %1329 = vperm.xlu0 %1328, %v1321
    %v1330 = vpop.permute.xlu0 %1329
    %v1332 = vmul.f32 %v1314, %v1325
    %v1333 = vmul.f32 %v1315, %v1330
    %v1334 = vsel %vm99, %v1332, 0.0
    %v1335 = vsel %vm99, %v1333, 0.0
    %v1336 = vadd.f32 %v1334, %v1335
    %v1337 = vrot.slane %v1336, 4
    %v1338 = vadd.f32 %v1336, %v1337
    %v1339 = vrot.slane %v1338, 2
    %v1340 = vadd.f32 %v1338, %v1339
    %v1341 = vrot.slane %v1340, 1
    %v1342 = vadd.f32 %v1340, %v1341
    %v1343 = vmul.f32 %v1332, %v1314
    %v1344 = vmul.f32 %v1333, %v1315
    %v1345 = vsel %vm99, %v1343, 0.0
    %v1346 = vsel %vm99, %v1344, 0.0
    %v1347 = vadd.f32 %v1345, %v1346
    %v1348 = vrot.slane %v1347, 4
    %v1349 = vadd.f32 %v1347, %v1348
    %v1350 = vrot.slane %v1349, 2
    %v1351 = vadd.f32 %v1349, %v1350
    %v1352 = vrot.slane %v1351, 1
    %v1353 = vadd.f32 %v1351, %v1352
    %v1354 = vmul.f32 %v1342, 0.07692308
    %v1355 = vmul.f32 %v1353, 0.07692308
    %v1356 = vmul.f32 %v1354, %v1354
    %v1357 = vsub.f32 %v1355, %v1356
    %v1358 = vmax.f32 %v1357, 0.0
    %v1359 = vsub.f32 %v1314, %v1354
    %v1360 = vsub.f32 %v1315, %v1354
    %v1361 = vadd.f32 %v1358, 1e-05
    %v1362 = vrsqrt.pop %v1361
    %v1363 = vmul.f32 %v1359, %v1362
    %v1364 = vmul.f32 %v1360, %v1362
    %v1365 = vld [vmem:[%s7] sm:$0x1]
    %v1367 = vlaneseq
    %v1368 = vshrl.u32 %v1367, 7
    %v1369 = vsub.s32 0, %v1368
    %v1370 = vrot.slane %v1365, %v1369
    %v1372 = vmul.f32 %v1363, %v1370
    %v1373 = vmul.f32 %v1364, %v1370
    %v1374 = vld [vmem:[%s8] sm:$0x1]
    %v1376 = vlaneseq
    %v1377 = vshrl.u32 %v1376, 7
    %v1378 = vsub.s32 0, %v1377
    %v1379 = vrot.slane %v1374, %v1378
    %v1381 = vadd.f32 %v1372, %v1379
    %v1382 = vadd.f32 %v1373, %v1379
    %v1383 = vld [vmem:[%s9] sm:$0xff]
    %v1384 = vld [vmem:[%s9 + $0x8] sm:$0xff]
    %v1385 = vld [vmem:[%s9 + $0x10] sm:$0xff]
    %v1386 = vld [vmem:[%s9 + $0x18] sm:$0xff]
    %v1387 = vld [vmem:[#allocation5] sm:$0x1]
    %v1389 = vlaneseq
    %v1390 = vshrl.u32 %v1389, 7
    %v1391 = vsub.s32 0, %v1390
    %v1392 = vrot.slane %v1387, %v1391
    %v1395 = vsel %vm99, %v1381, 0
    %v1398 = vsel %vm99, %v1382, 0
    %1400 = vmatprep.subr.mxu0 0.0
    %1401 = vmatpush1.msra.mxu0 0.0
    %1402 = vmatprep.subr.mxu0 0.0
    %1403 = vmatpush1.msra.mxu0 0.0
    %1404 = vmatprep.subr.mxu0 0.0
    %1405 = vmatpush1.msra.mxu0 0.0
    %1406 = vmatprep.subr.mxu0 0.0
    %1407 = vmatpush1.msra.mxu0 0.0
    %1408 = vmatprep.subr.mxu0 0.0
    %1409 = vmatpush1.msra.mxu0 0.0
    %1410 = vmatprep.subr.mxu0 0.0
    %1411 = vmatpush1.msra.mxu0 0.0
    %1412 = vmatprep.subr.mxu0 0.0
    %1413 = vmatpush1.msra.mxu0 0.0
    %1414 = vmatprep.subr.mxu0 0.0
    %1415 = vmatpush1.msra.mxu0 0.0
    %1416 = vmatprep.subr.mxu0 0.0
    %1417 = vmatpush1.msra.mxu0 0.0
    %1418 = vmatprep.subr.mxu0 0.0
    %1419 = vmatpush1.msra.mxu0 0.0
    %1420 = vmatprep.subr.mxu0 0.0
    %1421 = vmatpush1.msra.mxu0 0.0
    %1422 = vmatprep.subr.mxu0 0.0
    %1423 = vmatpush1.msra.mxu0 0.0
    %1424 = vmatprep.subr.mxu0 0.0
    %1425 = vmatpush1.msra.mxu0 %v1386
    %1426 = vmatprep.subr.mxu0 0.0
    %1427 = vmatpush1.msra.mxu0 %v1385
    %1428 = vmatprep.subr.mxu0 0.0
    %1429 = vmatpush1.msra.mxu0 %v1384
    %1430 = vmatprep.subr.mxu0 0.0
    %1431 = vmatpush1.msra.mxu0 %v1383
    %1432 = vmatprep.subr.mxu0 0.0
    %1433 = vmatpush2.msra.mxu0 0.0
    %1434 = vmatprep.subr.mxu0 0.0
    %1435 = vmatpush2.msra.mxu0 0.0
    %1436 = vmatprep.subr.mxu0 0.0
    %1437 = vmatpush2.msra.mxu0 0.0
    %1438 = vmatprep.subr.mxu0 0.0
    %1439 = vmatpush2.msra.mxu0 0.0
    %1440 = vmatprep.subr.mxu0 0.0
    %1441 = vmatpush2.msra.mxu0 0.0
    %1442 = vmatprep.subr.mxu0 0.0
    %1443 = vmatpush2.msra.mxu0 0.0
    %1444 = vmatprep.subr.mxu0 0.0
    %1445 = vmatpush2.msra.mxu0 0.0
    %1446 = vmatprep.subr.mxu0 0.0
    %1447 = vmatpush2.msra.mxu0 0.0
    %1448 = vmatprep.subr.mxu0 0.0
    %1449 = vmatpush2.msra.mxu0 0.0
    %1450 = vmatprep.subr.mxu0 0.0
    %1451 = vmatpush2.msra.mxu0 0.0
    %1452 = vmatprep.subr.mxu0 0.0
    %1453 = vmatpush2.msra.mxu0 0.0
    %1454 = vmatprep.subr.mxu0 0.0
    %1455 = vmatpush2.msra.mxu0 0.0
    %1456 = vmatprep.subr.mxu0 0.0
    %1457 = vmatpush2.msra.mxu0 0.0
    %1458 = vmatprep.subr.mxu0 0.0
    %1459 = vmatpush2.msra.mxu0 0.0
    %1460 = vmatprep.subr.mxu0 0.0
    %1461 = vmatpush2.msra.mxu0 0.0
    %1462 = vmatprep.subr.mxu0 0.0
    %1463 = vmatpush2.msra.mxu0 0.0
    %1464 = vmatprep.mubr.f32.mxu0 0.0
    %1465 = vmatmul.mubr.f32.gmra.mxu0 %v1395
    %v1466 = vpop.f32.mrf.mxu0
    %v1467 = vadd.f32 %v1392, %v1466
    %v1468 = vpop.f32.mrf.mxu0
    %1469 = vmatprep.mubr.f32.mxu0 0.0
    %1470 = vmatmul.mubr.f32.gmra.mxu0 %v1398
    %v1471 = vpop.f32.mrf.mxu0
    %v1472 = vadd.f32 %v1392, %v1471
    %v1473 = vpop.f32.mrf.mxu0
    %1474 = vdwg.mxu0
    %v1475 = vmax.f32 %v1467, 0.0
    %v1476 = vmax.f32 %v1472, 0.0
    %v1477 = vld [vmem:[%s11] sm:$0xff]
    %v1478 = vld [vmem:[%s11 + $0x8] sm:$0xff]
    %v1479 = vld [vmem:[%s11 + $0x10] sm:$0xff]
    %v1480 = vld [vmem:[%s11 + $0x18] sm:$0xff]
    %v1481 = vld [vmem:[%s11 + $0x20] sm:$0xff]
    %v1482 = vld [vmem:[%s11 + $0x28] sm:$0xff]
    %v1483 = vld [vmem:[%s11 + $0x30] sm:$0xff]
    %v1484 = vld [vmem:[%s11 + $0x38] sm:$0xff]
    %vm1485 = vcmask 523264
    %v1487 = vsel %vm1485, %v1475, 0
    %v1490 = vsel %vm1485, %v1476, 0
    %1492 = vmatprep.subr.mxu0 0.0
    %1493 = vmatpush1.msra.mxu0 0.0
    %1494 = vmatprep.subr.mxu0 0.0
    %1495 = vmatpush1.msra.mxu0 0.0
    %1496 = vmatprep.subr.mxu0 0.0
    %1497 = vmatpush1.msra.mxu0 0.0
    %1498 = vmatprep.subr.mxu0 0.0
    %1499 = vmatpush1.msra.mxu0 0.0
    %1500 = vmatprep.subr.mxu0 0.0
    %1501 = vmatpush1.msra.mxu0 0.0
    %1502 = vmatprep.subr.mxu0 0.0
    %1503 = vmatpush1.msra.mxu0 0.0
    %1504 = vmatprep.subr.mxu0 0.0
    %1505 = vmatpush1.msra.mxu0 0.0
    %1506 = vmatprep.subr.mxu0 0.0
    %1507 = vmatpush1.msra.mxu0 0.0
    %1508 = vmatprep.subr.mxu0 0.0
    %1509 = vmatpush1.msra.mxu0 %v1484
    %1510 = vmatprep.subr.mxu0 0.0
    %1511 = vmatpush1.msra.mxu0 %v1483
    %1512 = vmatprep.subr.mxu0 0.0
    %1513 = vmatpush1.msra.mxu0 %v1482
    %1514 = vmatprep.subr.mxu0 0.0
    %1515 = vmatpush1.msra.mxu0 %v1481
    %1516 = vmatprep.subr.mxu0 0.0
    %1517 = vmatpush1.msra.mxu0 %v1480
    %1518 = vmatprep.subr.mxu0 0.0
    %1519 = vmatpush1.msra.mxu0 %v1479
    %1520 = vmatprep.subr.mxu0 0.0
    %1521 = vmatpush1.msra.mxu0 %v1478
    %1522 = vmatprep.subr.mxu0 0.0
    %1523 = vmatpush1.msra.mxu0 %v1477
    %1524 = vmatprep.subr.mxu0 0.0
    %1525 = vmatpush2.msra.mxu0 0.0
    %1526 = vmatprep.subr.mxu0 0.0
    %1527 = vmatpush2.msra.mxu0 0.0
    %1528 = vmatprep.subr.mxu0 0.0
    %1529 = vmatpush2.msra.mxu0 0.0
    %1530 = vmatprep.subr.mxu0 0.0
    %1531 = vmatpush2.msra.mxu0 0.0
    %1532 = vmatprep.subr.mxu0 0.0
    %1533 = vmatpush2.msra.mxu0 0.0
    %1534 = vmatprep.subr.mxu0 0.0
    %1535 = vmatpush2.msra.mxu0 0.0
    %1536 = vmatprep.subr.mxu0 0.0
    %1537 = vmatpush2.msra.mxu0 0.0
    %1538 = vmatprep.subr.mxu0 0.0
    %1539 = vmatpush2.msra.mxu0 0.0
    %1540 = vmatprep.subr.mxu0 0.0
    %1541 = vmatpush2.msra.mxu0 0.0
    %1542 = vmatprep.subr.mxu0 0.0
    %1543 = vmatpush2.msra.mxu0 0.0
    %1544 = vmatprep.subr.mxu0 0.0
    %1545 = vmatpush2.msra.mxu0 0.0
    %1546 = vmatprep.subr.mxu0 0.0
    %1547 = vmatpush2.msra.mxu0 0.0
    %1548 = vmatprep.subr.mxu0 0.0
    %1549 = vmatpush2.msra.mxu0 0.0
    %1550 = vmatprep.subr.mxu0 0.0
    %1551 = vmatpush2.msra.mxu0 0.0
    %1552 = vmatprep.subr.mxu0 0.0
    %1553 = vmatpush2.msra.mxu0 0.0
    %1554 = vmatprep.subr.mxu0 0.0
    %1555 = vmatpush2.msra.mxu0 0.0
    %1556 = vmatprep.mubr.f32.mxu0 0.0
    %1557 = vmatmul.mubr.f32.gmra.mxu0 %v1487
    %v1558 = vpop.f32.mrf.mxu0
    %v1559 = vadd.f32 0.0, %v1558
    %v1560 = vpop.f32.mrf.mxu0
    %1561 = vmatprep.mubr.f32.mxu0 0.0
    %1562 = vmatmul.mubr.f32.gmra.mxu0 %v1490
    %v1563 = vpop.f32.mrf.mxu0
    %v1564 = vadd.f32 0.0, %v1563
    %v1565 = vpop.f32.mrf.mxu0
    %1566 = vdwg.mxu0
    %v1567 = vadd.f32 %v1381, %v1559
    %v1568 = vadd.f32 %v1382, %v1564
    %v1569 = vld [vmem:[%s12] sm:$0x1]
    %v1571 = vlaneseq
    %v1572 = vshrl.u32 %v1571, 7
    %v1573 = vsub.s32 0, %v1572
    %v1574 = vrot.slane %v1569, %v1573
    %v1576 = vadd.f32 %v1567, %v1574
    %v1577 = vadd.f32 %v1568, %v1574
    %1578 = vst.msk [vmem:[#allocation7] sm:$0xff] %vm99, %v1576
    %1579 = vst.msk [vmem:[#allocation7 + $0x8] sm:$0xff] %vm99, %v1577
    // Predicated region
    $region62: #{tpu_custom_call.1} parent=1 // pred_check
      _
    $region63: #{tpu_custom_call.1} parent=1 // pred_check_branch
      %1581 = sbr.rel (0) target = $region65
    $region64: #{tpu_custom_call.1} parent=1 // pred_region
      %s1583 = ssub.s32 256, 256
      %1584 = vsyncadd [#allocation4], %s1583
      %s1585 = sshll.u32 [#allocation7], 4
      %s1586 = int_to_ptr.vmem [resolvable:$true] %s1585
      %1591 = dma.vmem_to_hbm [thread:$0]  %s1586, 256, %s13, [#allocation4], 128, 128, 8
    $region65: #{tpu_custom_call.1} parent=1 // pred_fallthru
      _
    // Predicated region
    $region66: #{tpu_custom_call.1} parent=1 // pred_check
      _
    $region67: #{tpu_custom_call.1} parent=1 // pred_check_branch
      %1593 = sbr.rel (0) target = $region69
    $region68: #{tpu_custom_call.1} parent=1 // pred_region
      %1594 = dma.done [#allocation4], 256
    $region69: #{tpu_custom_call.1} parent=1 // pred_fallthru
      _
    %1595 = vsyncpa [#allocation3], 1
    %1596 = vsyncpa [#allocation6], 1
    %1597 = vsyncpa [#allocation4], 1

</llo_original>
